<compile_context>
chip_gen: v7x
topology: tpu7x:2x2x1
jax: 0.10.0
libtpu: 0.0.40
codegen_flags: <defaults>
</compile_context>

<pallas_src>
import jax
import jax.numpy as jnp
from jax.experimental import pallas as pl
from jax.experimental.pallas import tpu as pltpu

# ---------------- small synthetic config ----------------
HIDDEN = 32
INTERMEDIATE = 64
NUM_LAYERS = 2
NUM_HEADS = 4
HEAD_DIM = HIDDEN // NUM_HEADS
NUM_CHANNELS = 3
IMAGE_SIZE = 16
PATCH_SIZE = 8
NUM_PATCHES = (IMAGE_SIZE // PATCH_SIZE) ** 2          # 4 tokens / image
PATCH_FEATS = NUM_CHANNELS * PATCH_SIZE * PATCH_SIZE   # 192
LN_EPS = 1e-6
ATTN_SCALE = HEAD_DIM ** -0.5
BATCH = 2

# bf16 matmul operands (review item): weights live in HBM as bf16, activations
# are cast at the matmul boundary; all accumulation / elementwise math is f32.
MXU_DTYPE = jnp.bfloat16


def _mx(x):
    """Cast a matmul operand to the MXU input dtype."""
    return x.astype(MXU_DTYPE)


def _mm(a, b):
    """bf16 x bf16 -> f32 matmul, shared by kernel and reference."""
    return jnp.dot(_mx(a), _mx(b), preferred_element_type=jnp.float32)


# ---------------- shared math helpers (kernel + reference) ----------------
def _layernorm(x, gamma, beta, eps=LN_EPS):
    mean = jnp.mean(x, axis=-1, keepdims=True)
    var = jnp.mean((x - mean) ** 2, axis=-1, keepdims=True)
    return (x - mean) * jax.lax.rsqrt(var + eps) * gamma + beta


def _gelu_tanh(x):
    # matches nn.functional.gelu(..., approximate='tanh')
    c = jnp.float32(0.7978845608028654)  # sqrt(2/pi)
    return 0.5 * x * (1.0 + jnp.tanh(c * (x + 0.044715 * x * x * x)))


# ---------------- fused Pallas kernel (one grid step = one image, one layer) ----------------
def siglip_fused_kernel(patches_ref, conv_w_ref, conv_b_ref, pos_ref,
                        ln1_g_ref, ln1_b_ref,
                        wq_ref, bq_ref, wk_ref, bk_ref, wv_ref, bv_ref,
                        wo_ref, bo_ref,
                        ln2_g_ref, ln2_b_ref,
                        w1_ref, b1_ref, w2_ref, b2_ref,
                        post_g_ref, post_b_ref,
                        out_ref,
                        x_ref, attn_ref):
    layer = pl.program_id(1)

    # ---- embeddings, only at the first layer step of each image ----
    # Conv2d(kernel=P, stride=P) as im2col matmul + bias, plus a plain
    # broadcast add of the (N, D) positional table (no one-hot lookup matmul).
    @pl.when(layer == 0)
    def _():
        emb = jnp.dot(_mx(patches_ref[...]), conv_w_ref[...],
                      preferred_element_type=jnp.float32)
        x_ref[...] = emb + conv_b_ref[...] + pos_ref[...]

    x = x_ref[...]                                        # (N, D) f32, resident

    # ---- LayerNorm 1 + multi-head self-attention (per image, no mask) ----
    residual = x
    h = _layernorm(x, ln1_g_ref[...], ln1_b_ref[...])
    hb = _mx(h)
    q = jnp.dot(hb, wq_ref[...], preferred_element_type=jnp.float32) + bq_ref[...]
    k = jnp.dot(hb, wk_ref[...], preferred_element_type=jnp.float32) + bk_ref[...]
    v = jnp.dot(hb, wv_ref[...], preferred_element_type=jnp.float32) + bv_ref[...]

    for hh in range(NUM_HEADS):                           # static unroll over heads
        sl = slice(hh * HEAD_DIM, (hh + 1) * HEAD_DIM)
        qh, kh, vh = q[:, sl], k[:, sl], v[:, sl]         # (N, Hd)
        s = jax.lax.dot_general(                          # q @ k^T (no transpose op)
            _mx(qh), _mx(kh), (((1,), (1,)), ((), ())),
            preferred_element_type=jnp.float32) * ATTN_SCALE
        s = s - jnp.max(s, axis=-1, keepdims=True)
        e = jnp.exp(s)
        inv = pl.reciprocal(jnp.sum(e, axis=-1, keepdims=True), approx=True)
        p = e * inv
        oh = jnp.dot(_mx(p), _mx(vh), preferred_element_type=jnp.float32)
        # write this head at its lane offset; output projection stays K = D
        attn_ref[:, sl] = oh

    attn = jnp.dot(_mx(attn_ref[...]), wo_ref[...],
                   preferred_element_type=jnp.float32) + bo_ref[...]
    x = residual + attn

    # ---- LayerNorm 2 + MLP (tanh GELU) ----
    residual = x
    h = _layernorm(x, ln2_g_ref[...], ln2_b_ref[...])
    h = jnp.dot(_mx(h), w1_ref[...], preferred_element_type=jnp.float32) + b1_ref[...]
    h = _gelu_tanh(h)
    h = jnp.dot(_mx(h), w2_ref[...], preferred_element_type=jnp.float32) + b2_ref[...]
    x = residual + h

    x_ref[...] = x                                        # carry to next layer step

    # ---- final LayerNorm + output write, only at the last layer step ----
    @pl.when(layer == pl.num_programs(1) - 1)
    def _():
        out_ref[...] = _layernorm(x, post_g_ref[...], post_b_ref[...])


def siglip_forward_fused(patches, params):
    """patches: (B, N, C*P*P) f32 im2col slab."""
    B, N, F = patches.shape
    D, I, L = HIDDEN, INTERMEDIATE, NUM_LAYERS

    def const_spec(shape):
        return pl.BlockSpec(shape, lambda b, l: (0,) * len(shape))

    def per_image(shape):
        return pl.BlockSpec((None,) + shape, lambda b, l: (b, 0, 0))

    def per_layer(shape):
        return pl.BlockSpec((None,) + shape, lambda b, l: (l, 0, 0))

    in_specs = [
        per_image((N, F)),      # patches
        const_spec((F, D)),     # conv_w
        const_spec((1, D)),     # conv_b
        const_spec((N, D)),     # pos_emb (broadcast over batch via index_map)
        per_layer((1, D)),      # ln1_g
        per_layer((1, D)),      # ln1_b
        per_layer((D, D)),      # wq
        per_layer((1, D)),      # bq
        per_layer((D, D)),      # wk
        per_layer((1, D)),      # bk
        per_layer((D, D)),      # wv
        per_layer((1, D)),      # bv
        per_layer((D, D)),      # wo
        per_layer((1, D)),      # bo
        per_layer((1, D)),      # ln2_g
        per_layer((1, D)),      # ln2_b
        per_layer((D, I)),      # w1
        per_layer((1, I)),      # b1
        per_layer((I, D)),      # w2
        per_layer((1, D)),      # b2
        const_spec((1, D)),     # post_g
        const_spec((1, D)),     # post_b
    ]

    args = (patches, params["conv_w"], params["conv_b"], params["pos_emb"],
            params["ln1_g"], params["ln1_b"],
            params["wq"], params["bq"], params["wk"], params["bk"],
            params["wv"], params["bv"], params["wo"], params["bo"],
            params["ln2_g"], params["ln2_b"],
            params["w1"], params["b1"], params["w2"], params["b2"],
            params["post_g"], params["post_b"])

    return pl.pallas_call(
        siglip_fused_kernel,
        out_shape=jax.ShapeDtypeStruct((B, N, D), jnp.float32),
        grid=(B, L),
        in_specs=in_specs,
        out_specs=pl.BlockSpec((None, N, D), lambda b, l: (b, 0, 0)),
        scratch_shapes=[pltpu.VMEM((N, D), jnp.float32),   # resident activation
                        pltpu.VMEM((N, D), jnp.float32)],  # per-head attn slab
        compiler_params=pltpu.CompilerParams(
            dimension_semantics=("parallel", "arbitrary")),
    )(*args)


# ---------------- full model forward ----------------
def siglip_vision_model(pixel_values, params):
    """pixel_values: (B, C, H, W) float32 (NCHW, same as PyTorch)."""
    B, C, H, W = pixel_values.shape
    Hp, Wp = H // PATCH_SIZE, W // PATCH_SIZE
    N = Hp * Wp

    # glue: non-overlapping patch extraction == Conv2d(kernel=P, stride=P) im2col
    patches = pixel_values.reshape(B, C, Hp, PATCH_SIZE, Wp, PATCH_SIZE)
    patches = patches.transpose(0, 2, 4, 1, 3, 5)          # (B, Hp, Wp, C, P, P)
    patches = patches.reshape(B, N, C * PATCH_SIZE * PATCH_SIZE)

    return siglip_forward_fused(patches, params)           # (B, N, D)


# ---------------- pure-JAX reference (PyTorch-equivalent math, same bf16 operands) ----------------
def siglip_reference(pixel_values, params):
    B, C, H, W = pixel_values.shape
    Hp, Wp = H // PATCH_SIZE, W // PATCH_SIZE
    N = Hp * Wp
    patches = pixel_values.reshape(B, C, Hp, PATCH_SIZE, Wp, PATCH_SIZE)
    patches = patches.transpose(0, 2, 4, 1, 3, 5).reshape(B, N, -1)
    x = _mm(patches, params["conv_w"]) + params["conv_b"] + params["pos_emb"][None]
    for l in range(NUM_LAYERS):
        r = x
        h = _layernorm(x, params["ln1_g"][l], params["ln1_b"][l])
        q = _mm(h, params["wq"][l]) + params["bq"][l]
        k = _mm(h, params["wk"][l]) + params["bk"][l]
        v = _mm(h, params["wv"][l]) + params["bv"][l]
        q = q.reshape(B, N, NUM_HEADS, HEAD_DIM).transpose(0, 2, 1, 3)
        k = k.reshape(B, N, NUM_HEADS, HEAD_DIM).transpose(0, 2, 1, 3)
        v = v.reshape(B, N, NUM_HEADS, HEAD_DIM).transpose(0, 2, 1, 3)
        s = jnp.einsum("bhqd,bhkd->bhqk", _mx(q), _mx(k),
                       preferred_element_type=jnp.float32) * ATTN_SCALE
        p = jax.nn.softmax(s, axis=-1)
        o = jnp.einsum("bhqk,bhkd->bhqd", _mx(p), _mx(v),
                       preferred_element_type=jnp.float32)
        o = o.transpose(0, 2, 1, 3).reshape(B, N, HIDDEN)
        x = r + _mm(o, params["wo"][l]) + params["bo"][l]
        r = x
        h = _layernorm(x, params["ln2_g"][l], params["ln2_b"][l])
        h = _mm(h, params["w1"][l]) + params["b1"][l]
        h = _gelu_tanh(h)
        h = _mm(h, params["w2"][l]) + params["b2"][l]
        x = r + h
    return _layernorm(x, params["post_g"], params["post_b"])


# ---------------- parameter init (deterministic, synthetic, stacked per-layer) ----------------
def init_params(key):
    ks = iter(jax.random.split(key, 2 + 6 * NUM_LAYERS))
    sc = 0.05

    def draw_w(shape):
        # weights stored in HBM as bf16 (cast once here, never in-kernel)
        return (sc * jax.random.normal(next(ks), shape, jnp.float32)).astype(MXU_DTYPE)

    params = {
        # conv weight in kernel orientation (C*P*P, D); PyTorch is (D, C, P, P)
        "conv_w": draw_w((PATCH_FEATS, HIDDEN)),
        "conv_b": jnp.zeros((1, HIDDEN), jnp.float32),
        "pos_emb": (sc * jax.random.normal(next(ks), (NUM_PATCHES, HIDDEN),
                                           jnp.float32)),
        "post_g": jnp.ones((1, HIDDEN), jnp.float32),
        "post_b": jnp.zeros((1, HIDDEN), jnp.float32),
    }
    wq, wk, wv, wo, w1, w2 = [], [], [], [], [], []
    for _ in range(NUM_LAYERS):
        wq.append(draw_w((HIDDEN, HIDDEN)))
        wk.append(draw_w((HIDDEN, HIDDEN)))
        wv.append(draw_w((HIDDEN, HIDDEN)))
        wo.append(draw_w((HIDDEN, HIDDEN)))
        w1.append(draw_w((HIDDEN, INTERMEDIATE)))
        w2.append(draw_w((INTERMEDIATE, HIDDEN)))
    zeros_d = jnp.zeros((NUM_LAYERS, 1, HIDDEN), jnp.float32)
    params.update({
        "ln1_g": jnp.ones((NUM_LAYERS, 1, HIDDEN), jnp.float32),
        "ln1_b": zeros_d,
        "ln2_g": jnp.ones((NUM_LAYERS, 1, HIDDEN), jnp.float32),
        "ln2_b": zeros_d,
        "wq": jnp.stack(wq), "wk": jnp.stack(wk),
        "wv": jnp.stack(wv), "wo": jnp.stack(wo),
        "bq": zeros_d, "bk": zeros_d, "bv": zeros_d, "bo": zeros_d,
        "w1": jnp.stack(w1),
        "b1": jnp.zeros((NUM_LAYERS, 1, INTERMEDIATE), jnp.float32),
        "w2": jnp.stack(w2),
        "b2": zeros_d,
    })
    return params


if __name__ == "__main__":
    key = jax.random.PRNGKey(0)
    k_px, k_params = jax.random.split(key)
    pixel_values = jax.random.normal(
        k_px, (BATCH, NUM_CHANNELS, IMAGE_SIZE, IMAGE_SIZE), jnp.float32)
    params = init_params(k_params)

    model = jax.jit(siglip_vision_model)
    out = jax.block_until_ready(model(pixel_values, params))

    assert out.shape == (BATCH, NUM_PATCHES, HIDDEN)
    assert bool(jnp.all(jnp.isfinite(out)))

    # parity vs a pure-JAX PyTorch-equivalent reference (bf16 matmul operands in
    # both; tolerance covers the approx softmax reciprocal + accumulation order)
    ref = jax.block_until_ready(siglip_reference(pixel_values, params))
    err = float(jnp.max(jnp.abs(out - ref)))
    assert err < 1e-2, f"mismatch vs reference: max abs err = {err:e}"

    print("KERNEL_OK")
</pallas_src>

<mosaic_0001>
module attributes {stable_mosaic.version = 11 : i64} {
  func.func @siglip_fused_kernel(%arg0: i32, %arg1: i32, %arg2: memref<1x4x192xf32, #tpu.memory_space<vmem>>, %arg3: memref<192x32xbf16, #tpu.memory_space<vmem>>, %arg4: memref<1x32xf32, #tpu.memory_space<vmem>>, %arg5: memref<4x32xf32, #tpu.memory_space<vmem>>, %arg6: memref<1x1x32xf32, #tpu.memory_space<vmem>>, %arg7: memref<1x1x32xf32, #tpu.memory_space<vmem>>, %arg8: memref<1x32x32xbf16, #tpu.memory_space<vmem>>, %arg9: memref<1x1x32xf32, #tpu.memory_space<vmem>>, %arg10: memref<1x32x32xbf16, #tpu.memory_space<vmem>>, %arg11: memref<1x1x32xf32, #tpu.memory_space<vmem>>, %arg12: memref<1x32x32xbf16, #tpu.memory_space<vmem>>, %arg13: memref<1x1x32xf32, #tpu.memory_space<vmem>>, %arg14: memref<1x32x32xbf16, #tpu.memory_space<vmem>>, %arg15: memref<1x1x32xf32, #tpu.memory_space<vmem>>, %arg16: memref<1x1x32xf32, #tpu.memory_space<vmem>>, %arg17: memref<1x1x32xf32, #tpu.memory_space<vmem>>, %arg18: memref<1x32x64xbf16, #tpu.memory_space<vmem>>, %arg19: memref<1x1x64xf32, #tpu.memory_space<vmem>>, %arg20: memref<1x64x32xbf16, #tpu.memory_space<vmem>>, %arg21: memref<1x1x32xf32, #tpu.memory_space<vmem>>, %arg22: memref<1x32xf32, #tpu.memory_space<vmem>>, %arg23: memref<1x32xf32, #tpu.memory_space<vmem>>, %arg24: memref<1x4x32xf32, #tpu.memory_space<vmem>>, %arg25: memref<4x32xf32, #tpu.memory_space<vmem>>, %arg26: memref<4x32xf32, #tpu.memory_space<vmem>>) attributes {dimension_semantics = [#tpu.dimension_semantics<parallel>, #tpu.dimension_semantics<arbitrary>], iteration_bounds = array<i64: 2, 2>, scalar_prefetch = 0 : i64, scratch_operands = 2 : i64, tpu.core_type = #tpu.core_type<tc>, window_params = [{transform_indices = @transform_0, window_bounds = array<i64: 1, 4, 192>}, {pipeline_mode = #tpu.pipeline_mode<synchronous>, transform_indices = @transform_1, window_bounds = array<i64: 192, 32>}, {pipeline_mode = #tpu.pipeline_mode<synchronous>, transform_indices = @transform_2, window_bounds = array<i64: 1, 32>}, {pipeline_mode = #tpu.pipeline_mode<synchronous>, transform_indices = @transform_3, window_bounds = array<i64: 4, 32>}, {transform_indices = @transform_4, window_bounds = array<i64: 1, 1, 32>}, {transform_indices = @transform_5, window_bounds = array<i64: 1, 1, 32>}, {transform_indices = @transform_6, window_bounds = array<i64: 1, 32, 32>}, {transform_indices = @transform_7, window_bounds = array<i64: 1, 1, 32>}, {transform_indices = @transform_8, window_bounds = array<i64: 1, 32, 32>}, {transform_indices = @transform_9, window_bounds = array<i64: 1, 1, 32>}, {transform_indices = @transform_10, window_bounds = array<i64: 1, 32, 32>}, {transform_indices = @transform_11, window_bounds = array<i64: 1, 1, 32>}, {transform_indices = @transform_12, window_bounds = array<i64: 1, 32, 32>}, {transform_indices = @transform_13, window_bounds = array<i64: 1, 1, 32>}, {transform_indices = @transform_14, window_bounds = array<i64: 1, 1, 32>}, {transform_indices = @transform_15, window_bounds = array<i64: 1, 1, 32>}, {transform_indices = @transform_16, window_bounds = array<i64: 1, 32, 64>}, {transform_indices = @transform_17, window_bounds = array<i64: 1, 1, 64>}, {transform_indices = @transform_18, window_bounds = array<i64: 1, 64, 32>}, {transform_indices = @transform_19, window_bounds = array<i64: 1, 1, 32>}, {pipeline_mode = #tpu.pipeline_mode<synchronous>, transform_indices = @transform_20, window_bounds = array<i64: 1, 32>}, {pipeline_mode = #tpu.pipeline_mode<synchronous>, transform_indices = @transform_21, window_bounds = array<i64: 1, 32>}, {transform_indices = @transform_22, window_bounds = array<i64: 1, 4, 32>}]} {
    %c0_i32 = arith.constant 0 : i32
    %0 = arith.cmpi eq, %arg1, %c0_i32 : i32
    %1 = arith.extui %0 : i1 to i32
    %c0_i32_0 = arith.constant 0 : i32
    %2 = arith.cmpi ne, %1, %c0_i32_0 : i32
    scf.if %2 {
      %c0_99 = arith.constant 0 : index
      %c0_100 = arith.constant 0 : index
      %c0_101 = arith.constant 0 : index
      %210 = vector.load %arg2[%c0_99, %c0_100, %c0_101] : memref<1x4x192xf32, #tpu.memory_space<vmem>>, vector<1x4x192xf32>
      %211 = vector.shape_cast %210 : vector<1x4x192xf32> to vector<4x192xf32>
      %212 = arith.truncf %211 : vector<4x192xf32> to vector<4x192xbf16>
      %c0_102 = arith.constant 0 : index
      %c0_103 = arith.constant 0 : index
      %213 = vector.load %arg3[%c0_102, %c0_103] : memref<192x32xbf16, #tpu.memory_space<vmem>>, vector<192x32xbf16>
      %cst_104 = arith.constant dense<0.000000e+00> : vector<4x32xf32>
      %214 = tpu.matmul %212, %213, %cst_104 {dimension_numbers = #tpu.dot_dimension_numbers<[1], [0], [0], [1], [0, 0, 1, 1], [], []>} : vector<4x192xbf16>, vector<192x32xbf16>, vector<4x32xf32> -> vector<4x32xf32>
      %c0_105 = arith.constant 0 : index
      %c0_106 = arith.constant 0 : index
      %215 = vector.load %arg4[%c0_105, %c0_106] : memref<1x32xf32, #tpu.memory_space<vmem>>, vector<1x32xf32>
      %216 = vector.broadcast %215 : vector<1x32xf32> to vector<4x32xf32>
      %217 = arith.addf %214, %216 : vector<4x32xf32>
      %c0_107 = arith.constant 0 : index
      %c0_108 = arith.constant 0 : index
      %218 = vector.load %arg5[%c0_107, %c0_108] : memref<4x32xf32, #tpu.memory_space<vmem>>, vector<4x32xf32>
      %219 = arith.addf %217, %218 : vector<4x32xf32>
      %c0_109 = arith.constant 0 : index
      %c0_110 = arith.constant 0 : index
      %220 = vector.load %arg25[%c0_109, %c0_110] : memref<4x32xf32, #tpu.memory_space<vmem>>, vector<4x32xf32>
      tpu.vector_store %arg25[%c0_109, %c0_110], %219 {strides = array<i32>} : memref<4x32xf32, #tpu.memory_space<vmem>>, vector<4x32xf32>,
    } else {
    }
    %c0 = arith.constant 0 : index
    %c0_1 = arith.constant 0 : index
    %3 = vector.load %arg25[%c0, %c0_1] : memref<4x32xf32, #tpu.memory_space<vmem>>, vector<4x32xf32>
    %c0_2 = arith.constant 0 : index
    %c0_3 = arith.constant 0 : index
    %c0_4 = arith.constant 0 : index
    %4 = vector.load %arg6[%c0_2, %c0_3, %c0_4] : memref<1x1x32xf32, #tpu.memory_space<vmem>>, vector<1x1x32xf32>
    %5 = vector.shape_cast %4 : vector<1x1x32xf32> to vector<1x32xf32>
    %c0_5 = arith.constant 0 : index
    %c0_6 = arith.constant 0 : index
    %c0_7 = arith.constant 0 : index
    %6 = vector.load %arg7[%c0_5, %c0_6, %c0_7] : memref<1x1x32xf32, #tpu.memory_space<vmem>>, vector<1x1x32xf32>
    %7 = vector.shape_cast %6 : vector<1x1x32xf32> to vector<1x32xf32>
    %cst = arith.constant dense<0.000000e+00> : vector<4xf32>
    %8 = vector.multi_reduction <add>, %3, %cst [1] : vector<4x32xf32> to vector<4xf32>
    %9 = vector.shape_cast %8 : vector<4xf32> to vector<4x1xf32>
    %cst_8 = arith.constant 3.200000e+01 : f32
    %10 = vector.broadcast %cst_8 : f32 to vector<4x1xf32>
    %11 = arith.divf %9, %10 : vector<4x1xf32>
    %12 = vector.broadcast %11 : vector<4x1xf32> to vector<4x32xf32>
    %13 = arith.subf %3, %12 : vector<4x32xf32>
    %14 = arith.mulf %13, %13 : vector<4x32xf32>
    %cst_9 = arith.constant dense<0.000000e+00> : vector<4xf32>
    %15 = vector.multi_reduction <add>, %14, %cst_9 [1] : vector<4x32xf32> to vector<4xf32>
    %16 = vector.shape_cast %15 : vector<4xf32> to vector<4x1xf32>
    %cst_10 = arith.constant 3.200000e+01 : f32
    %17 = vector.broadcast %cst_10 : f32 to vector<4x1xf32>
    %18 = arith.divf %16, %17 : vector<4x1xf32>
    %19 = vector.broadcast %11 : vector<4x1xf32> to vector<4x32xf32>
    %20 = arith.subf %3, %19 : vector<4x32xf32>
    %cst_11 = arith.constant 9.99999997E-7 : f32
    %21 = vector.broadcast %cst_11 : f32 to vector<4x1xf32>
    %22 = arith.addf %18, %21 : vector<4x1xf32>
    %23 = math.rsqrt %22 : vector<4x1xf32>
    %24 = vector.broadcast %23 : vector<4x1xf32> to vector<4x32xf32>
    %25 = arith.mulf %20, %24 : vector<4x32xf32>
    %26 = vector.broadcast %5 : vector<1x32xf32> to vector<4x32xf32>
    %27 = arith.mulf %25, %26 : vector<4x32xf32>
    %28 = vector.broadcast %7 : vector<1x32xf32> to vector<4x32xf32>
    %29 = arith.addf %27, %28 : vector<4x32xf32>
    %30 = arith.truncf %29 : vector<4x32xf32> to vector<4x32xbf16>
    %c0_12 = arith.constant 0 : index
    %c0_13 = arith.constant 0 : index
    %c0_14 = arith.constant 0 : index
    %31 = vector.load %arg8[%c0_12, %c0_13, %c0_14] : memref<1x32x32xbf16, #tpu.memory_space<vmem>>, vector<1x32x32xbf16>
    %32 = vector.shape_cast %31 : vector<1x32x32xbf16> to vector<32x32xbf16>
    %cst_15 = arith.constant dense<0.000000e+00> : vector<4x32xf32>
    %33 = tpu.matmul %30, %32, %cst_15 {dimension_numbers = #tpu.dot_dimension_numbers<[1], [0], [0], [1], [0, 0, 1, 1], [], []>} : vector<4x32xbf16>, vector<32x32xbf16>, vector<4x32xf32> -> vector<4x32xf32>
    %c0_16 = arith.constant 0 : index
    %c0_17 = arith.constant 0 : index
    %c0_18 = arith.constant 0 : index
    %34 = vector.load %arg9[%c0_16, %c0_17, %c0_18] : memref<1x1x32xf32, #tpu.memory_space<vmem>>, vector<1x1x32xf32>
    %35 = vector.shape_cast %34 : vector<1x1x32xf32> to vector<1x32xf32>
    %36 = vector.broadcast %35 : vector<1x32xf32> to vector<4x32xf32>
    %37 = arith.addf %33, %36 : vector<4x32xf32>
    %c0_19 = arith.constant 0 : index
    %c0_20 = arith.constant 0 : index
    %c0_21 = arith.constant 0 : index
    %38 = vector.load %arg10[%c0_19, %c0_20, %c0_21] : memref<1x32x32xbf16, #tpu.memory_space<vmem>>, vector<1x32x32xbf16>
    %39 = vector.shape_cast %38 : vector<1x32x32xbf16> to vector<32x32xbf16>
    %cst_22 = arith.constant dense<0.000000e+00> : vector<4x32xf32>
    %40 = tpu.matmul %30, %39, %cst_22 {dimension_numbers = #tpu.dot_dimension_numbers<[1], [0], [0], [1], [0, 0, 1, 1], [], []>} : vector<4x32xbf16>, vector<32x32xbf16>, vector<4x32xf32> -> vector<4x32xf32>
    %c0_23 = arith.constant 0 : index
    %c0_24 = arith.constant 0 : index
    %c0_25 = arith.constant 0 : index
    %41 = vector.load %arg11[%c0_23, %c0_24, %c0_25] : memref<1x1x32xf32, #tpu.memory_space<vmem>>, vector<1x1x32xf32>
    %42 = vector.shape_cast %41 : vector<1x1x32xf32> to vector<1x32xf32>
    %43 = vector.broadcast %42 : vector<1x32xf32> to vector<4x32xf32>
    %44 = arith.addf %40, %43 : vector<4x32xf32>
    %c0_26 = arith.constant 0 : index
    %c0_27 = arith.constant 0 : index
    %c0_28 = arith.constant 0 : index
    %45 = vector.load %arg12[%c0_26, %c0_27, %c0_28] : memref<1x32x32xbf16, #tpu.memory_space<vmem>>, vector<1x32x32xbf16>
    %46 = vector.shape_cast %45 : vector<1x32x32xbf16> to vector<32x32xbf16>
    %cst_29 = arith.constant dense<0.000000e+00> : vector<4x32xf32>
    %47 = tpu.matmul %30, %46, %cst_29 {dimension_numbers = #tpu.dot_dimension_numbers<[1], [0], [0], [1], [0, 0, 1, 1], [], []>} : vector<4x32xbf16>, vector<32x32xbf16>, vector<4x32xf32> -> vector<4x32xf32>
    %c0_30 = arith.constant 0 : index
    %c0_31 = arith.constant 0 : index
    %c0_32 = arith.constant 0 : index
    %48 = vector.load %arg13[%c0_30, %c0_31, %c0_32] : memref<1x1x32xf32, #tpu.memory_space<vmem>>, vector<1x1x32xf32>
    %49 = vector.shape_cast %48 : vector<1x1x32xf32> to vector<1x32xf32>
    %50 = vector.broadcast %49 : vector<1x32xf32> to vector<4x32xf32>
    %51 = arith.addf %47, %50 : vector<4x32xf32>
    %52 = vector.extract_strided_slice %37 {offsets = [0, 0], sizes = [4, 8], strides = [1, 1]} : vector<4x32xf32> to vector<4x8xf32>
    %53 = vector.extract_strided_slice %44 {offsets = [0, 0], sizes = [4, 8], strides = [1, 1]} : vector<4x32xf32> to vector<4x8xf32>
    %54 = vector.extract_strided_slice %51 {offsets = [0, 0], sizes = [4, 8], strides = [1, 1]} : vector<4x32xf32> to vector<4x8xf32>
    %55 = arith.truncf %52 : vector<4x8xf32> to vector<4x8xbf16>
    %56 = arith.truncf %53 : vector<4x8xf32> to vector<4x8xbf16>
    %cst_33 = arith.constant dense<0.000000e+00> : vector<4x4xf32>
    %57 = tpu.matmul %55, %56, %cst_33 {dimension_numbers = #tpu.dot_dimension_numbers<[1], [1], [0], [0], [0, 0, 1, 0], [], []>} : vector<4x8xbf16>, vector<4x8xbf16>, vector<4x4xf32> -> vector<4x4xf32>
    %cst_34 = arith.constant 0.353553385 : f32
    %58 = vector.broadcast %cst_34 : f32 to vector<4x4xf32>
    %59 = arith.mulf %57, %58 : vector<4x4xf32>
    %cst_35 = arith.constant dense<0xFF800000> : vector<4xf32>
    %60 = vector.multi_reduction <maximumf>, %59, %cst_35 [1] : vector<4x4xf32> to vector<4xf32>
    %61 = vector.shape_cast %60 : vector<4xf32> to vector<4x1xf32>
    %62 = vector.broadcast %61 : vector<4x1xf32> to vector<4x4xf32>
    %63 = arith.subf %59, %62 : vector<4x4xf32>
    %64 = math.exp %63 : vector<4x4xf32>
    %cst_36 = arith.constant dense<0.000000e+00> : vector<4xf32>
    %65 = vector.multi_reduction <add>, %64, %cst_36 [1] : vector<4x4xf32> to vector<4xf32>
    %66 = vector.shape_cast %65 : vector<4xf32> to vector<4x1xf32>
    %67 = tpu.reciprocal %66 {approx = true} : vector<4x1xf32> -> vector<4x1xf32>
    %68 = vector.broadcast %67 : vector<4x1xf32> to vector<4x4xf32>
    %69 = arith.mulf %64, %68 : vector<4x4xf32>
    %70 = arith.truncf %69 : vector<4x4xf32> to vector<4x4xbf16>
    %71 = arith.truncf %54 : vector<4x8xf32> to vector<4x8xbf16>
    %cst_37 = arith.constant dense<0.000000e+00> : vector<4x8xf32>
    %72 = tpu.matmul %70, %71, %cst_37 {dimension_numbers = #tpu.dot_dimension_numbers<[1], [0], [0], [1], [0, 0, 1, 1], [], []>} : vector<4x4xbf16>, vector<4x8xbf16>, vector<4x8xf32> -> vector<4x8xf32>
    %c0_38 = arith.constant 0 : index
    %c0_39 = arith.constant 0 : index
    %73 = vector.load %arg26[%c0_38, %c0_39] : memref<4x32xf32, #tpu.memory_space<vmem>>, vector<4x8xf32>
    tpu.vector_store %arg26[%c0_38, %c0_39], %72 {strides = array<i32>} : memref<4x32xf32, #tpu.memory_space<vmem>>, vector<4x8xf32>,
    %74 = vector.extract_strided_slice %37 {offsets = [0, 8], sizes = [4, 8], strides = [1, 1]} : vector<4x32xf32> to vector<4x8xf32>
    %75 = vector.extract_strided_slice %44 {offsets = [0, 8], sizes = [4, 8], strides = [1, 1]} : vector<4x32xf32> to vector<4x8xf32>
    %76 = vector.extract_strided_slice %51 {offsets = [0, 8], sizes = [4, 8], strides = [1, 1]} : vector<4x32xf32> to vector<4x8xf32>
    %77 = arith.truncf %74 : vector<4x8xf32> to vector<4x8xbf16>
    %78 = arith.truncf %75 : vector<4x8xf32> to vector<4x8xbf16>
    %cst_40 = arith.constant dense<0.000000e+00> : vector<4x4xf32>
    %79 = tpu.matmul %77, %78, %cst_40 {dimension_numbers = #tpu.dot_dimension_numbers<[1], [1], [0], [0], [0, 0, 1, 0], [], []>} : vector<4x8xbf16>, vector<4x8xbf16>, vector<4x4xf32> -> vector<4x4xf32>
    %cst_41 = arith.constant 0.353553385 : f32
    %80 = vector.broadcast %cst_41 : f32 to vector<4x4xf32>
    %81 = arith.mulf %79, %80 : vector<4x4xf32>
    %cst_42 = arith.constant dense<0xFF800000> : vector<4xf32>
    %82 = vector.multi_reduction <maximumf>, %81, %cst_42 [1] : vector<4x4xf32> to vector<4xf32>
    %83 = vector.shape_cast %82 : vector<4xf32> to vector<4x1xf32>
    %84 = vector.broadcast %83 : vector<4x1xf32> to vector<4x4xf32>
    %85 = arith.subf %81, %84 : vector<4x4xf32>
    %86 = math.exp %85 : vector<4x4xf32>
    %cst_43 = arith.constant dense<0.000000e+00> : vector<4xf32>
    %87 = vector.multi_reduction <add>, %86, %cst_43 [1] : vector<4x4xf32> to vector<4xf32>
    %88 = vector.shape_cast %87 : vector<4xf32> to vector<4x1xf32>
    %89 = tpu.reciprocal %88 {approx = true} : vector<4x1xf32> -> vector<4x1xf32>
    %90 = vector.broadcast %89 : vector<4x1xf32> to vector<4x4xf32>
    %91 = arith.mulf %86, %90 : vector<4x4xf32>
    %92 = arith.truncf %91 : vector<4x4xf32> to vector<4x4xbf16>
    %93 = arith.truncf %76 : vector<4x8xf32> to vector<4x8xbf16>
    %cst_44 = arith.constant dense<0.000000e+00> : vector<4x8xf32>
    %94 = tpu.matmul %92, %93, %cst_44 {dimension_numbers = #tpu.dot_dimension_numbers<[1], [0], [0], [1], [0, 0, 1, 1], [], []>} : vector<4x4xbf16>, vector<4x8xbf16>, vector<4x8xf32> -> vector<4x8xf32>
    %c0_45 = arith.constant 0 : index
    %c8 = arith.constant 8 : index
    %95 = vector.load %arg26[%c0_45, %c8] : memref<4x32xf32, #tpu.memory_space<vmem>>, vector<4x8xf32>
    tpu.vector_store %arg26[%c0_45, %c8], %94 {strides = array<i32>} : memref<4x32xf32, #tpu.memory_space<vmem>>, vector<4x8xf32>,
    %96 = vector.extract_strided_slice %37 {offsets = [0, 16], sizes = [4, 8], strides = [1, 1]} : vector<4x32xf32> to vector<4x8xf32>
    %97 = vector.extract_strided_slice %44 {offsets = [0, 16], sizes = [4, 8], strides = [1, 1]} : vector<4x32xf32> to vector<4x8xf32>
    %98 = vector.extract_strided_slice %51 {offsets = [0, 16], sizes = [4, 8], strides = [1, 1]} : vector<4x32xf32> to vector<4x8xf32>
    %99 = arith.truncf %96 : vector<4x8xf32> to vector<4x8xbf16>
    %100 = arith.truncf %97 : vector<4x8xf32> to vector<4x8xbf16>
    %cst_46 = arith.constant dense<0.000000e+00> : vector<4x4xf32>
    %101 = tpu.matmul %99, %100, %cst_46 {dimension_numbers = #tpu.dot_dimension_numbers<[1], [1], [0], [0], [0, 0, 1, 0], [], []>} : vector<4x8xbf16>, vector<4x8xbf16>, vector<4x4xf32> -> vector<4x4xf32>
    %cst_47 = arith.constant 0.353553385 : f32
    %102 = vector.broadcast %cst_47 : f32 to vector<4x4xf32>
    %103 = arith.mulf %101, %102 : vector<4x4xf32>
    %cst_48 = arith.constant dense<0xFF800000> : vector<4xf32>
    %104 = vector.multi_reduction <maximumf>, %103, %cst_48 [1] : vector<4x4xf32> to vector<4xf32>
    %105 = vector.shape_cast %104 : vector<4xf32> to vector<4x1xf32>
    %106 = vector.broadcast %105 : vector<4x1xf32> to vector<4x4xf32>
    %107 = arith.subf %103, %106 : vector<4x4xf32>
    %108 = math.exp %107 : vector<4x4xf32>
    %cst_49 = arith.constant dense<0.000000e+00> : vector<4xf32>
    %109 = vector.multi_reduction <add>, %108, %cst_49 [1] : vector<4x4xf32> to vector<4xf32>
    %110 = vector.shape_cast %109 : vector<4xf32> to vector<4x1xf32>
    %111 = tpu.reciprocal %110 {approx = true} : vector<4x1xf32> -> vector<4x1xf32>
    %112 = vector.broadcast %111 : vector<4x1xf32> to vector<4x4xf32>
    %113 = arith.mulf %108, %112 : vector<4x4xf32>
    %114 = arith.truncf %113 : vector<4x4xf32> to vector<4x4xbf16>
    %115 = arith.truncf %98 : vector<4x8xf32> to vector<4x8xbf16>
    %cst_50 = arith.constant dense<0.000000e+00> : vector<4x8xf32>
    %116 = tpu.matmul %114, %115, %cst_50 {dimension_numbers = #tpu.dot_dimension_numbers<[1], [0], [0], [1], [0, 0, 1, 1], [], []>} : vector<4x4xbf16>, vector<4x8xbf16>, vector<4x8xf32> -> vector<4x8xf32>
    %c0_51 = arith.constant 0 : index
    %c16 = arith.constant 16 : index
    %117 = vector.load %arg26[%c0_51, %c16] : memref<4x32xf32, #tpu.memory_space<vmem>>, vector<4x8xf32>
    tpu.vector_store %arg26[%c0_51, %c16], %116 {strides = array<i32>} : memref<4x32xf32, #tpu.memory_space<vmem>>, vector<4x8xf32>,
    %118 = vector.extract_strided_slice %37 {offsets = [0, 24], sizes = [4, 8], strides = [1, 1]} : vector<4x32xf32> to vector<4x8xf32>
    %119 = vector.extract_strided_slice %44 {offsets = [0, 24], sizes = [4, 8], strides = [1, 1]} : vector<4x32xf32> to vector<4x8xf32>
    %120 = vector.extract_strided_slice %51 {offsets = [0, 24], sizes = [4, 8], strides = [1, 1]} : vector<4x32xf32> to vector<4x8xf32>
    %121 = arith.truncf %118 : vector<4x8xf32> to vector<4x8xbf16>
    %122 = arith.truncf %119 : vector<4x8xf32> to vector<4x8xbf16>
    %cst_52 = arith.constant dense<0.000000e+00> : vector<4x4xf32>
    %123 = tpu.matmul %121, %122, %cst_52 {dimension_numbers = #tpu.dot_dimension_numbers<[1], [1], [0], [0], [0, 0, 1, 0], [], []>} : vector<4x8xbf16>, vector<4x8xbf16>, vector<4x4xf32> -> vector<4x4xf32>
    %cst_53 = arith.constant 0.353553385 : f32
    %124 = vector.broadcast %cst_53 : f32 to vector<4x4xf32>
    %125 = arith.mulf %123, %124 : vector<4x4xf32>
    %cst_54 = arith.constant dense<0xFF800000> : vector<4xf32>
    %126 = vector.multi_reduction <maximumf>, %125, %cst_54 [1] : vector<4x4xf32> to vector<4xf32>
    %127 = vector.shape_cast %126 : vector<4xf32> to vector<4x1xf32>
    %128 = vector.broadcast %127 : vector<4x1xf32> to vector<4x4xf32>
    %129 = arith.subf %125, %128 : vector<4x4xf32>
    %130 = math.exp %129 : vector<4x4xf32>
    %cst_55 = arith.constant dense<0.000000e+00> : vector<4xf32>
    %131 = vector.multi_reduction <add>, %130, %cst_55 [1] : vector<4x4xf32> to vector<4xf32>
    %132 = vector.shape_cast %131 : vector<4xf32> to vector<4x1xf32>
    %133 = tpu.reciprocal %132 {approx = true} : vector<4x1xf32> -> vector<4x1xf32>
    %134 = vector.broadcast %133 : vector<4x1xf32> to vector<4x4xf32>
    %135 = arith.mulf %130, %134 : vector<4x4xf32>
    %136 = arith.truncf %135 : vector<4x4xf32> to vector<4x4xbf16>
    %137 = arith.truncf %120 : vector<4x8xf32> to vector<4x8xbf16>
    %cst_56 = arith.constant dense<0.000000e+00> : vector<4x8xf32>
    %138 = tpu.matmul %136, %137, %cst_56 {dimension_numbers = #tpu.dot_dimension_numbers<[1], [0], [0], [1], [0, 0, 1, 1], [], []>} : vector<4x4xbf16>, vector<4x8xbf16>, vector<4x8xf32> -> vector<4x8xf32>
    %c0_57 = arith.constant 0 : index
    %c24 = arith.constant 24 : index
    %139 = vector.load %arg26[%c0_57, %c24] : memref<4x32xf32, #tpu.memory_space<vmem>>, vector<4x8xf32>
    tpu.vector_store %arg26[%c0_57, %c24], %138 {strides = array<i32>} : memref<4x32xf32, #tpu.memory_space<vmem>>, vector<4x8xf32>,
    %c0_58 = arith.constant 0 : index
    %c0_59 = arith.constant 0 : index
    %140 = vector.load %arg26[%c0_58, %c0_59] : memref<4x32xf32, #tpu.memory_space<vmem>>, vector<4x32xf32>
    %141 = arith.truncf %140 : vector<4x32xf32> to vector<4x32xbf16>
    %c0_60 = arith.constant 0 : index
    %c0_61 = arith.constant 0 : index
    %c0_62 = arith.constant 0 : index
    %142 = vector.load %arg14[%c0_60, %c0_61, %c0_62] : memref<1x32x32xbf16, #tpu.memory_space<vmem>>, vector<1x32x32xbf16>
    %143 = vector.shape_cast %142 : vector<1x32x32xbf16> to vector<32x32xbf16>
    %cst_63 = arith.constant dense<0.000000e+00> : vector<4x32xf32>
    %144 = tpu.matmul %141, %143, %cst_63 {dimension_numbers = #tpu.dot_dimension_numbers<[1], [0], [0], [1], [0, 0, 1, 1], [], []>} : vector<4x32xbf16>, vector<32x32xbf16>, vector<4x32xf32> -> vector<4x32xf32>
    %c0_64 = arith.constant 0 : index
    %c0_65 = arith.constant 0 : index
    %c0_66 = arith.constant 0 : index
    %145 = vector.load %arg15[%c0_64, %c0_65, %c0_66] : memref<1x1x32xf32, #tpu.memory_space<vmem>>, vector<1x1x32xf32>
    %146 = vector.shape_cast %145 : vector<1x1x32xf32> to vector<1x32xf32>
    %147 = vector.broadcast %146 : vector<1x32xf32> to vector<4x32xf32>
    %148 = arith.addf %144, %147 : vector<4x32xf32>
    %149 = arith.addf %3, %148 : vector<4x32xf32>
    %c0_67 = arith.constant 0 : index
    %c0_68 = arith.constant 0 : index
    %c0_69 = arith.constant 0 : index
    %150 = vector.load %arg16[%c0_67, %c0_68, %c0_69] : memref<1x1x32xf32, #tpu.memory_space<vmem>>, vector<1x1x32xf32>
    %151 = vector.shape_cast %150 : vector<1x1x32xf32> to vector<1x32xf32>
    %c0_70 = arith.constant 0 : index
    %c0_71 = arith.constant 0 : index
    %c0_72 = arith.constant 0 : index
    %152 = vector.load %arg17[%c0_70, %c0_71, %c0_72] : memref<1x1x32xf32, #tpu.memory_space<vmem>>, vector<1x1x32xf32>
    %153 = vector.shape_cast %152 : vector<1x1x32xf32> to vector<1x32xf32>
    %cst_73 = arith.constant dense<0.000000e+00> : vector<4xf32>
    %154 = vector.multi_reduction <add>, %149, %cst_73 [1] : vector<4x32xf32> to vector<4xf32>
    %155 = vector.shape_cast %154 : vector<4xf32> to vector<4x1xf32>
    %cst_74 = arith.constant 3.200000e+01 : f32
    %156 = vector.broadcast %cst_74 : f32 to vector<4x1xf32>
    %157 = arith.divf %155, %156 : vector<4x1xf32>
    %158 = vector.broadcast %157 : vector<4x1xf32> to vector<4x32xf32>
    %159 = arith.subf %149, %158 : vector<4x32xf32>
    %160 = arith.mulf %159, %159 : vector<4x32xf32>
    %cst_75 = arith.constant dense<0.000000e+00> : vector<4xf32>
    %161 = vector.multi_reduction <add>, %160, %cst_75 [1] : vector<4x32xf32> to vector<4xf32>
    %162 = vector.shape_cast %161 : vector<4xf32> to vector<4x1xf32>
    %cst_76 = arith.constant 3.200000e+01 : f32
    %163 = vector.broadcast %cst_76 : f32 to vector<4x1xf32>
    %164 = arith.divf %162, %163 : vector<4x1xf32>
    %165 = vector.broadcast %157 : vector<4x1xf32> to vector<4x32xf32>
    %166 = arith.subf %149, %165 : vector<4x32xf32>
    %cst_77 = arith.constant 9.99999997E-7 : f32
    %167 = vector.broadcast %cst_77 : f32 to vector<4x1xf32>
    %168 = arith.addf %164, %167 : vector<4x1xf32>
    %169 = math.rsqrt %168 : vector<4x1xf32>
    %170 = vector.broadcast %169 : vector<4x1xf32> to vector<4x32xf32>
    %171 = arith.mulf %166, %170 : vector<4x32xf32>
    %172 = vector.broadcast %151 : vector<1x32xf32> to vector<4x32xf32>
    %173 = arith.mulf %171, %172 : vector<4x32xf32>
    %174 = vector.broadcast %153 : vector<1x32xf32> to vector<4x32xf32>
    %175 = arith.addf %173, %174 : vector<4x32xf32>
    %176 = arith.truncf %175 : vector<4x32xf32> to vector<4x32xbf16>
    %c0_78 = arith.constant 0 : index
    %c0_79 = arith.constant 0 : index
    %c0_80 = arith.constant 0 : index
    %177 = vector.load %arg18[%c0_78, %c0_79, %c0_80] : memref<1x32x64xbf16, #tpu.memory_space<vmem>>, vector<1x32x64xbf16>
    %178 = vector.shape_cast %177 : vector<1x32x64xbf16> to vector<32x64xbf16>
    %cst_81 = arith.constant dense<0.000000e+00> : vector<4x64xf32>
    %179 = tpu.matmul %176, %178, %cst_81 {dimension_numbers = #tpu.dot_dimension_numbers<[1], [0], [0], [1], [0, 0, 1, 1], [], []>} : vector<4x32xbf16>, vector<32x64xbf16>, vector<4x64xf32> -> vector<4x64xf32>
    %c0_82 = arith.constant 0 : index
    %c0_83 = arith.constant 0 : index
    %c0_84 = arith.constant 0 : index
    %180 = vector.load %arg19[%c0_82, %c0_83, %c0_84] : memref<1x1x64xf32, #tpu.memory_space<vmem>>, vector<1x1x64xf32>
    %181 = vector.shape_cast %180 : vector<1x1x64xf32> to vector<1x64xf32>
    %182 = vector.broadcast %181 : vector<1x64xf32> to vector<4x64xf32>
    %183 = arith.addf %179, %182 : vector<4x64xf32>
    %cst_85 = arith.constant 5.000000e-01 : f32
    %184 = vector.broadcast %cst_85 : f32 to vector<4x64xf32>
    %185 = arith.mulf %184, %183 : vector<4x64xf32>
    %cst_86 = arith.constant 4.471500e-02 : f32
    %186 = vector.broadcast %cst_86 : f32 to vector<4x64xf32>
    %187 = arith.mulf %186, %183 : vector<4x64xf32>
    %188 = arith.mulf %187, %183 : vector<4x64xf32>
    %189 = arith.mulf %188, %183 : vector<4x64xf32>
    %190 = arith.addf %183, %189 : vector<4x64xf32>
    %cst_87 = arith.constant 0.797884583 : f32
    %191 = vector.broadcast %cst_87 : f32 to vector<4x64xf32>
    %192 = arith.mulf %191, %190 : vector<4x64xf32>
    %193 = math.tanh %192 : vector<4x64xf32>
    %cst_88 = arith.constant 1.000000e+00 : f32
    %194 = vector.broadcast %cst_88 : f32 to vector<4x64xf32>
    %195 = arith.addf %194, %193 : vector<4x64xf32>
    %196 = arith.mulf %185, %195 : vector<4x64xf32>
    %197 = arith.truncf %196 : vector<4x64xf32> to vector<4x64xbf16>
    %c0_89 = arith.constant 0 : index
    %c0_90 = arith.constant 0 : index
    %c0_91 = arith.constant 0 : index
    %198 = vector.load %arg20[%c0_89, %c0_90, %c0_91] : memref<1x64x32xbf16, #tpu.memory_space<vmem>>, vector<1x64x32xbf16>
    %199 = vector.shape_cast %198 : vector<1x64x32xbf16> to vector<64x32xbf16>
    %cst_92 = arith.constant dense<0.000000e+00> : vector<4x32xf32>
    %200 = tpu.matmul %197, %199, %cst_92 {dimension_numbers = #tpu.dot_dimension_numbers<[1], [0], [0], [1], [0, 0, 1, 1], [], []>} : vector<4x64xbf16>, vector<64x32xbf16>, vector<4x32xf32> -> vector<4x32xf32>
    %c0_93 = arith.constant 0 : index
    %c0_94 = arith.constant 0 : index
    %c0_95 = arith.constant 0 : index
    %201 = vector.load %arg21[%c0_93, %c0_94, %c0_95] : memref<1x1x32xf32, #tpu.memory_space<vmem>>, vector<1x1x32xf32>
    %202 = vector.shape_cast %201 : vector<1x1x32xf32> to vector<1x32xf32>
    %203 = vector.broadcast %202 : vector<1x32xf32> to vector<4x32xf32>
    %204 = arith.addf %200, %203 : vector<4x32xf32>
    %205 = arith.addf %149, %204 : vector<4x32xf32>
    %c0_96 = arith.constant 0 : index
    %c0_97 = arith.constant 0 : index
    %206 = vector.load %arg25[%c0_96, %c0_97] : memref<4x32xf32, #tpu.memory_space<vmem>>, vector<4x32xf32>
    tpu.vector_store %arg25[%c0_96, %c0_97], %205 {strides = array<i32>} : memref<4x32xf32, #tpu.memory_space<vmem>>, vector<4x32xf32>,
    %c1_i32 = arith.constant 1 : i32
    %207 = arith.cmpi eq, %arg1, %c1_i32 : i32
    %208 = arith.extui %207 : i1 to i32
    %c0_i32_98 = arith.constant 0 : i32
    %209 = arith.cmpi ne, %208, %c0_i32_98 : i32
    scf.if %209 {
      %c0_99 = arith.constant 0 : index
      %c0_100 = arith.constant 0 : index
      %210 = vector.load %arg22[%c0_99, %c0_100] : memref<1x32xf32, #tpu.memory_space<vmem>>, vector<1x32xf32>
      %c0_101 = arith.constant 0 : index
      %c0_102 = arith.constant 0 : index
      %211 = vector.load %arg23[%c0_101, %c0_102] : memref<1x32xf32, #tpu.memory_space<vmem>>, vector<1x32xf32>
      %cst_103 = arith.constant dense<0.000000e+00> : vector<4xf32>
      %212 = vector.multi_reduction <add>, %205, %cst_103 [1] : vector<4x32xf32> to vector<4xf32>
      %213 = vector.shape_cast %212 : vector<4xf32> to vector<4x1xf32>
      %cst_104 = arith.constant 3.200000e+01 : f32
      %214 = vector.broadcast %cst_104 : f32 to vector<4x1xf32>
      %215 = arith.divf %213, %214 : vector<4x1xf32>
      %216 = vector.broadcast %215 : vector<4x1xf32> to vector<4x32xf32>
      %217 = arith.subf %205, %216 : vector<4x32xf32>
      %218 = arith.mulf %217, %217 : vector<4x32xf32>
      %cst_105 = arith.constant dense<0.000000e+00> : vector<4xf32>
      %219 = vector.multi_reduction <add>, %218, %cst_105 [1] : vector<4x32xf32> to vector<4xf32>
      %220 = vector.shape_cast %219 : vector<4xf32> to vector<4x1xf32>
      %cst_106 = arith.constant 3.200000e+01 : f32
      %221 = vector.broadcast %cst_106 : f32 to vector<4x1xf32>
      %222 = arith.divf %220, %221 : vector<4x1xf32>
      %223 = vector.broadcast %215 : vector<4x1xf32> to vector<4x32xf32>
      %224 = arith.subf %205, %223 : vector<4x32xf32>
      %cst_107 = arith.constant 9.99999997E-7 : f32
      %225 = vector.broadcast %cst_107 : f32 to vector<4x1xf32>
      %226 = arith.addf %222, %225 : vector<4x1xf32>
      %227 = math.rsqrt %226 : vector<4x1xf32>
      %228 = vector.broadcast %227 : vector<4x1xf32> to vector<4x32xf32>
      %229 = arith.mulf %224, %228 : vector<4x32xf32>
      %230 = vector.broadcast %210 : vector<1x32xf32> to vector<4x32xf32>
      %231 = arith.mulf %229, %230 : vector<4x32xf32>
      %232 = vector.broadcast %211 : vector<1x32xf32> to vector<4x32xf32>
      %233 = arith.addf %231, %232 : vector<4x32xf32>
      %c0_108 = arith.constant 0 : index
      %c0_109 = arith.constant 0 : index
      %c0_110 = arith.constant 0 : index
      %234 = vector.load %arg24[%c0_108, %c0_109, %c0_110] : memref<1x4x32xf32, #tpu.memory_space<vmem>>, vector<1x4x32xf32>
      %235 = vector.shape_cast %234 : vector<1x4x32xf32> to vector<4x32xf32>
      %236 = vector.shape_cast %233 : vector<4x32xf32> to vector<1x4x32xf32>
      tpu.vector_store %arg24[%c0_108, %c0_109, %c0_110], %236 {strides = array<i32>} : memref<1x4x32xf32, #tpu.memory_space<vmem>>, vector<1x4x32xf32>,
    } else {
    }
    return
  }
  func.func @transform_0(%arg0: i32, %arg1: i32) -> (i32, i32, i32) {
    %c0_i32 = arith.constant 0 : i32
    %c0_i32_0 = arith.constant 0 : i32
    %c0_i32_1 = arith.constant 0 : i32
    return %arg0, %c0_i32, %c0_i32_0 : i32, i32, i32
  }
  func.func @transform_1(%arg0: i32, %arg1: i32) -> (i32, i32) {
    %c0_i32 = arith.constant 0 : i32
    %c0_i32_0 = arith.constant 0 : i32
    %c0_i32_1 = arith.constant 0 : i32
    return %c0_i32, %c0_i32_0 : i32, i32
  }
  func.func @transform_2(%arg0: i32, %arg1: i32) -> (i32, i32) {
    %c0_i32 = arith.constant 0 : i32
    %c0_i32_0 = arith.constant 0 : i32
    %c0_i32_1 = arith.constant 0 : i32
    return %c0_i32, %c0_i32_0 : i32, i32
  }
  func.func @transform_3(%arg0: i32, %arg1: i32) -> (i32, i32) {
    %c0_i32 = arith.constant 0 : i32
    %c0_i32_0 = arith.constant 0 : i32
    %c0_i32_1 = arith.constant 0 : i32
    return %c0_i32, %c0_i32_0 : i32, i32
  }
  func.func @transform_4(%arg0: i32, %arg1: i32) -> (i32, i32, i32) {
    %c0_i32 = arith.constant 0 : i32
    %c0_i32_0 = arith.constant 0 : i32
    %c0_i32_1 = arith.constant 0 : i32
    return %arg1, %c0_i32, %c0_i32_0 : i32, i32, i32
  }
  func.func @transform_5(%arg0: i32, %arg1: i32) -> (i32, i32, i32) {
    %c0_i32 = arith.constant 0 : i32
    %c0_i32_0 = arith.constant 0 : i32
    %c0_i32_1 = arith.constant 0 : i32
    return %arg1, %c0_i32, %c0_i32_0 : i32, i32, i32
  }
  func.func @transform_6(%arg0: i32, %arg1: i32) -> (i32, i32, i32) {
    %c0_i32 = arith.constant 0 : i32
    %c0_i32_0 = arith.constant 0 : i32
    %c0_i32_1 = arith.constant 0 : i32
    return %arg1, %c0_i32, %c0_i32_0 : i32, i32, i32
  }
  func.func @transform_7(%arg0: i32, %arg1: i32) -> (i32, i32, i32) {
    %c0_i32 = arith.constant 0 : i32
    %c0_i32_0 = arith.constant 0 : i32
    %c0_i32_1 = arith.constant 0 : i32
    return %arg1, %c0_i32, %c0_i32_0 : i32, i32, i32
  }
  func.func @transform_8(%arg0: i32, %arg1: i32) -> (i32, i32, i32) {
    %c0_i32 = arith.constant 0 : i32
    %c0_i32_0 = arith.constant 0 : i32
    %c0_i32_1 = arith.constant 0 : i32
    return %arg1, %c0_i32, %c0_i32_0 : i32, i32, i32
  }
  func.func @transform_9(%arg0: i32, %arg1: i32) -> (i32, i32, i32) {
    %c0_i32 = arith.constant 0 : i32
    %c0_i32_0 = arith.constant 0 : i32
    %c0_i32_1 = arith.constant 0 : i32
    return %arg1, %c0_i32, %c0_i32_0 : i32, i32, i32
  }
  func.func @transform_10(%arg0: i32, %arg1: i32) -> (i32, i32, i32) {
    %c0_i32 = arith.constant 0 : i32
    %c0_i32_0 = arith.constant 0 : i32
    %c0_i32_1 = arith.constant 0 : i32
    return %arg1, %c0_i32, %c0_i32_0 : i32, i32, i32
  }
  func.func @transform_11(%arg0: i32, %arg1: i32) -> (i32, i32, i32) {
    %c0_i32 = arith.constant 0 : i32
    %c0_i32_0 = arith.constant 0 : i32
    %c0_i32_1 = arith.constant 0 : i32
    return %arg1, %c0_i32, %c0_i32_0 : i32, i32, i32
  }
  func.func @transform_12(%arg0: i32, %arg1: i32) -> (i32, i32, i32) {
    %c0_i32 = arith.constant 0 : i32
    %c0_i32_0 = arith.constant 0 : i32
    %c0_i32_1 = arith.constant 0 : i32
    return %arg1, %c0_i32, %c0_i32_0 : i32, i32, i32
  }
  func.func @transform_13(%arg0: i32, %arg1: i32) -> (i32, i32, i32) {
    %c0_i32 = arith.constant 0 : i32
    %c0_i32_0 = arith.constant 0 : i32
    %c0_i32_1 = arith.constant 0 : i32
    return %arg1, %c0_i32, %c0_i32_0 : i32, i32, i32
  }
  func.func @transform_14(%arg0: i32, %arg1: i32) -> (i32, i32, i32) {
    %c0_i32 = arith.constant 0 : i32
    %c0_i32_0 = arith.constant 0 : i32
    %c0_i32_1 = arith.constant 0 : i32
    return %arg1, %c0_i32, %c0_i32_0 : i32, i32, i32
  }
  func.func @transform_15(%arg0: i32, %arg1: i32) -> (i32, i32, i32) {
    %c0_i32 = arith.constant 0 : i32
    %c0_i32_0 = arith.constant 0 : i32
    %c0_i32_1 = arith.constant 0 : i32
    return %arg1, %c0_i32, %c0_i32_0 : i32, i32, i32
  }
  func.func @transform_16(%arg0: i32, %arg1: i32) -> (i32, i32, i32) {
    %c0_i32 = arith.constant 0 : i32
    %c0_i32_0 = arith.constant 0 : i32
    %c0_i32_1 = arith.constant 0 : i32
    return %arg1, %c0_i32, %c0_i32_0 : i32, i32, i32
  }
  func.func @transform_17(%arg0: i32, %arg1: i32) -> (i32, i32, i32) {
    %c0_i32 = arith.constant 0 : i32
    %c0_i32_0 = arith.constant 0 : i32
    %c0_i32_1 = arith.constant 0 : i32
    return %arg1, %c0_i32, %c0_i32_0 : i32, i32, i32
  }
  func.func @transform_18(%arg0: i32, %arg1: i32) -> (i32, i32, i32) {
    %c0_i32 = arith.constant 0 : i32
    %c0_i32_0 = arith.constant 0 : i32
    %c0_i32_1 = arith.constant 0 : i32
    return %arg1, %c0_i32, %c0_i32_0 : i32, i32, i32
  }
  func.func @transform_19(%arg0: i32, %arg1: i32) -> (i32, i32, i32) {
    %c0_i32 = arith.constant 0 : i32
    %c0_i32_0 = arith.constant 0 : i32
    %c0_i32_1 = arith.constant 0 : i32
    return %arg1, %c0_i32, %c0_i32_0 : i32, i32, i32
  }
  func.func @transform_20(%arg0: i32, %arg1: i32) -> (i32, i32) {
    %c0_i32 = arith.constant 0 : i32
    %c0_i32_0 = arith.constant 0 : i32
    %c0_i32_1 = arith.constant 0 : i32
    return %c0_i32, %c0_i32_0 : i32, i32
  }
  func.func @transform_21(%arg0: i32, %arg1: i32) -> (i32, i32) {
    %c0_i32 = arith.constant 0 : i32
    %c0_i32_0 = arith.constant 0 : i32
    %c0_i32_1 = arith.constant 0 : i32
    return %c0_i32, %c0_i32_0 : i32, i32
  }
  func.func @transform_22(%arg0: i32, %arg1: i32) -> (i32, i32, i32) {
    %c0_i32 = arith.constant 0 : i32
    %c0_i32_0 = arith.constant 0 : i32
    %c0_i32_1 = arith.constant 0 : i32
    return %arg0, %c0_i32, %c0_i32_0 : i32, i32, i32
  }
}

</mosaic_0001>

<llo_original>
// kernel: siglip_vision_model.1
$region0: #{siglip_vision_model.1}
  #allocation0 [shape = 'u32[]', space=smem, size = 0x4, offset = 0x4, fixed_abs, tag = 'smem constant byte address 0x4 - core index']
  #allocation1 [shape = 'u32[144,128]{1,0:T(1,128)}', space=vmem, size = 0x12000, scoped, tag = 'internal scratch']
  #allocation2 [shape = 'f32[4,32]{1,0:T(4,128)}', space=vmem, size = 0x800, scoped, tag = 'scratch operand']
  #allocation3 [shape = 'f32[4,32]{1,0:T(4,128)}', space=vmem, size = 0x800, scoped, tag = 'scratch operand']
  %s0 = inlined_call_operand.vmem [shape: f32[2,4,192], index: 0, kind: input, shape index: {}]
  %s1 = inlined_call_operand.vmem [shape: bf16[192,32], index: 1, kind: input, shape index: {}]
  %s2 = inlined_call_operand.vmem [shape: f32[1,32], index: 2, kind: input, shape index: {}]
  %s3 = inlined_call_operand.vmem [shape: f32[4,32], index: 3, kind: input, shape index: {}]
  %s4 = inlined_call_operand.vmem [shape: f32[2,1,32], index: 4, kind: input, shape index: {}]
  %s5 = inlined_call_operand.vmem [shape: f32[2,1,32], index: 5, kind: input, shape index: {}]
  %s6 = inlined_call_operand.vmem [shape: bf16[2,32,32], index: 6, kind: input, shape index: {}]
  %s7 = inlined_call_operand.vmem [shape: f32[2,1,32], index: 7, kind: input, shape index: {}]
  %s8 = inlined_call_operand.vmem [shape: bf16[2,32,32], index: 8, kind: input, shape index: {}]
  %s9 = inlined_call_operand.vmem [shape: f32[2,1,32], index: 9, kind: input, shape index: {}]
  %s10 = inlined_call_operand.vmem [shape: bf16[2,32,32], index: 10, kind: input, shape index: {}]
  %s11 = inlined_call_operand.vmem [shape: f32[2,1,32], index: 11, kind: input, shape index: {}]
  %s12 = inlined_call_operand.vmem [shape: bf16[2,32,32], index: 12, kind: input, shape index: {}]
  %s13 = inlined_call_operand.vmem [shape: f32[2,1,32], index: 13, kind: input, shape index: {}]
  %s14 = inlined_call_operand.vmem [shape: f32[2,1,32], index: 14, kind: input, shape index: {}]
  %s15 = inlined_call_operand.vmem [shape: f32[2,1,32], index: 15, kind: input, shape index: {}]
  %s16 = inlined_call_operand.vmem [shape: bf16[2,32,64], index: 16, kind: input, shape index: {}]
  %s17 = inlined_call_operand.vmem [shape: f32[2,1,64], index: 17, kind: input, shape index: {}]
  %s18 = inlined_call_operand.vmem [shape: bf16[2,64,32], index: 18, kind: input, shape index: {}]
  %s19 = inlined_call_operand.vmem [shape: f32[2,1,32], index: 19, kind: input, shape index: {}]
  %s20 = inlined_call_operand.vmem [shape: f32[1,32], index: 20, kind: input, shape index: {}]
  %s21 = inlined_call_operand.vmem [shape: f32[1,32], index: 21, kind: input, shape index: {}]
  %s22 = inlined_call_operand.hbm [shape: f32[2,4,32], index: 22, kind: output, shape index: {}]
  %s23 = sld [smem:[#allocation0]]
  $region129: #{siglip_vision_model.1} parent=0
    _
  %s25 = ssub.s32 1, %s23
  %s26 = scalar_select 0, %s25, %s23
  $region1: #{siglip_vision_model.1} parent=0
    #allocation4 [shape = 'u8[4096]{0}', space=vmem, size = 0x1000, scoped, tag = 'output window, operand 0']
    #allocation5 [shape = 's32[2]{0}', space=sflag, size = 0x8, scoped, tag = 'scoped memory for siglip_vision_model.1']
    %27 = vsyncpa [#allocation5], 0
    %s28 = scalar_lea.sflag [#allocation5], 1
    %29 = vsyncpa %s28, 0
    loop: start=0, step=1, limit=6
    $region2: #{siglip_vision_model.1} parent=1 // loop_pre_header
      _
    $region3: #{siglip_vision_model.1} parent=1 // loop_header
      %s31 = sphi 0, %s35
      %p32 = scmp.ge.s32.totalorder %s31, 6
      %s38 = sphi 0, %s50
      %s39 = sphi 0, %s46
      %s40 = sphi 0, %s38
      %s41 = sphi 0, %s39
      %s42 = sphi 0, %s40
      %s43 = sphi 0, %s41
      %s53 = sphi 0, %s55
      %s56 = sphi 0, %s53
      %s57 = sphi 0, %s56
      %s73 = sphi 0, %s57
      %s77 = sphi 0, %s77
      %s79 = sphi 0, %s77
      %s80 = sphi 0, %s79
      %s94 = sphi 0, %s80
      %s98 = sphi 0, %s98
      %s100 = sphi 0, %s98
      %s101 = sphi 0, %s100
      %s115 = sphi 0, %s101
      %s119 = sphi 0, %s119
      %s121 = sphi 0, %s119
      %s122 = sphi 0, %s121
      %s136 = sphi 0, %s122
      %s142 = sphi 0, %s144
      %s145 = sphi 0, %s142
      %s146 = sphi 0, %s145
      %s162 = sphi 0, %s146
      %s168 = sphi 0, %s170
      %s171 = sphi 0, %s168
      %s172 = sphi 0, %s171
      %s188 = sphi 0, %s172
      %s194 = sphi 0, %s196
      %s197 = sphi 0, %s194
      %s198 = sphi 0, %s197
      %s214 = sphi 0, %s198
      %s220 = sphi 0, %s222
      %s223 = sphi 0, %s220
      %s224 = sphi 0, %s223
      %s240 = sphi 0, %s224
      %s246 = sphi 0, %s248
      %s249 = sphi 0, %s246
      %s250 = sphi 0, %s249
      %s266 = sphi 0, %s250
      %s272 = sphi 0, %s274
      %s275 = sphi 0, %s272
      %s276 = sphi 0, %s275
      %s292 = sphi 0, %s276
      %s298 = sphi 0, %s300
      %s301 = sphi 0, %s298
      %s302 = sphi 0, %s301
      %s318 = sphi 0, %s302
      %s324 = sphi 0, %s326
      %s327 = sphi 0, %s324
      %s328 = sphi 0, %s327
      %s344 = sphi 0, %s328
      %s350 = sphi 0, %s352
      %s353 = sphi 0, %s350
      %s354 = sphi 0, %s353
      %s370 = sphi 0, %s354
      %s376 = sphi 0, %s378
      %s379 = sphi 0, %s376
      %s380 = sphi 0, %s379
      %s396 = sphi 0, %s380
      %s402 = sphi 0, %s404
      %s405 = sphi 0, %s402
      %s406 = sphi 0, %s405
      %s422 = sphi 0, %s406
      %s428 = sphi 0, %s430
      %s431 = sphi 0, %s428
      %s432 = sphi 0, %s431
      %s448 = sphi 0, %s432
      %s454 = sphi 0, %s456
      %s457 = sphi 0, %s454
      %s458 = sphi 0, %s457
      %s474 = sphi 0, %s458
      %s480 = sphi 0, %s482
      %s483 = sphi 0, %s480
      %s484 = sphi 0, %s483
      %s500 = sphi 0, %s484
      %s506 = sphi 0, %s508
      %s509 = sphi 0, %s506
      %s510 = sphi 0, %s509
      %s526 = sphi 0, %s510
      %s532 = sphi 0, %s534
      %s535 = sphi 0, %s532
      %s536 = sphi 0, %s535
      %s552 = sphi 0, %s536
      %s556 = sphi 0, %s556
      %s558 = sphi 0, %s556
      %s559 = sphi 0, %s558
      %s573 = sphi 0, %s559
      %s577 = sphi 0, %s577
      %s579 = sphi 0, %s577
      %s580 = sphi 0, %s579
      %s594 = sphi 0, %s580
      %s600 = sphi 0, %s602
      %s603 = sphi 0, %s600
      %s604 = sphi 0, %s603
      %s620 = sphi 0, %s604
    $region4: #{siglip_vision_model.1} parent=1 // loop_header_branch
      %34 = sbr.rel (%p32) target = $region8
    $region5: #{siglip_vision_model.1} parent=1 // loop_body
      %s36 = ssub.s32 %s31, 1
      %s37 = ssub.s32 %s31, 2
      %s44 = sadd.s32 1, %s39
      %p45 = scmp.ge.s32.totalorder %s44, 2
      %s46 = scalar_select %p45, 0, %s44
      %s47 = sadd.s32 1, %s38
      %s48 = scalar_select %p45, %s47, %s38
      %p49 = scmp.ge.s32.totalorder %s48, 2
      %s50 = scalar_select %p49, 0, %s48
      %s51 = ssub.s32 %s38, %s50
      %p52 = scmp.eq.s32.totalorder %s51, 0
      %s54 = sadd.s32 %s53, 1
      %s55 = scalar_select %p52, %s53, %s54
      %p58 = pneg %p52
      %p59 = scmp.eq.s32.totalorder %s31, 3
      %p60 = por %p58, %p59
      %p61 = scmp.ne.s32.totalorder %s53, %s56
      %p62 = scmp.eq.s32.totalorder %s31, 0
      %p63 = por %p61, %p62
      %p64 = scmp.ne.s32.totalorder %s53, %s56
      %p65 = scmp.eq.s32.totalorder %s36, 3
      %p66 = por %p64, %p65
      %p67 = scmp.ne.s32.totalorder %s56, %s57
      %p68 = scmp.eq.s32.totalorder %s36, 0
      %p69 = por %p67, %p68
      %p70 = scmp.ne.s32.totalorder %s56, %s57
      %p71 = scmp.eq.s32.totalorder %s37, 3
      %p72 = por %p70, %p71
      %p74 = scmp.ne.s32.totalorder %s57, %s73
      %p75 = scmp.eq.s32.totalorder %s37, 0
      %p76 = por %p74, %p75
      %s78 = sadd.s32 %s77, 1
      %p81 = scmp.eq.s32.totalorder %s31, 3
      %p82 = scmp.ne.s32.totalorder %s77, %s79
      %p83 = scmp.eq.s32.totalorder %s31, 0
      %p84 = por %p82, %p83
      %p85 = scmp.ne.s32.totalorder %s77, %s79
      %p86 = scmp.eq.s32.totalorder %s36, 3
      %p87 = por %p85, %p86
      %p88 = scmp.ne.s32.totalorder %s79, %s80
      %p89 = scmp.eq.s32.totalorder %s36, 0
      %p90 = por %p88, %p89
      %p91 = scmp.ne.s32.totalorder %s79, %s80
      %p92 = scmp.eq.s32.totalorder %s37, 3
      %p93 = por %p91, %p92
      %p95 = scmp.ne.s32.totalorder %s80, %s94
      %p96 = scmp.eq.s32.totalorder %s37, 0
      %p97 = por %p95, %p96
      %s99 = sadd.s32 %s98, 1
      %p102 = scmp.eq.s32.totalorder %s31, 3
      %p103 = scmp.ne.s32.totalorder %s98, %s100
      %p104 = scmp.eq.s32.totalorder %s31, 0
      %p105 = por %p103, %p104
      %p106 = scmp.ne.s32.totalorder %s98, %s100
      %p107 = scmp.eq.s32.totalorder %s36, 3
      %p108 = por %p106, %p107
      %p109 = scmp.ne.s32.totalorder %s100, %s101
      %p110 = scmp.eq.s32.totalorder %s36, 0
      %p111 = por %p109, %p110
      %p112 = scmp.ne.s32.totalorder %s100, %s101
      %p113 = scmp.eq.s32.totalorder %s37, 3
      %p114 = por %p112, %p113
      %p116 = scmp.ne.s32.totalorder %s101, %s115
      %p117 = scmp.eq.s32.totalorder %s37, 0
      %p118 = por %p116, %p117
      %s120 = sadd.s32 %s119, 1
      %p123 = scmp.eq.s32.totalorder %s31, 3
      %p124 = scmp.ne.s32.totalorder %s119, %s121
      %p125 = scmp.eq.s32.totalorder %s31, 0
      %p126 = por %p124, %p125
      %p127 = scmp.ne.s32.totalorder %s119, %s121
      %p128 = scmp.eq.s32.totalorder %s36, 3
      %p129 = por %p127, %p128
      %p130 = scmp.ne.s32.totalorder %s121, %s122
      %p131 = scmp.eq.s32.totalorder %s36, 0
      %p132 = por %p130, %p131
      %p133 = scmp.ne.s32.totalorder %s121, %s122
      %p134 = scmp.eq.s32.totalorder %s37, 3
      %p135 = por %p133, %p134
      %p137 = scmp.ne.s32.totalorder %s122, %s136
      %p138 = scmp.eq.s32.totalorder %s37, 0
      %p139 = por %p137, %p138
      %s140 = ssub.s32 %s39, %s46
      %p141 = scmp.eq.s32.totalorder %s140, 0
      %s143 = sadd.s32 %s142, 1
      %s144 = scalar_select %p141, %s142, %s143
      %p147 = pneg %p141
      %p148 = scmp.eq.s32.totalorder %s31, 3
      %p149 = por %p147, %p148
      %p150 = scmp.ne.s32.totalorder %s142, %s145
      %p151 = scmp.eq.s32.totalorder %s31, 0
      %p152 = por %p150, %p151
      %p153 = scmp.ne.s32.totalorder %s142, %s145
      %p154 = scmp.eq.s32.totalorder %s36, 3
      %p155 = por %p153, %p154
      %p156 = scmp.ne.s32.totalorder %s145, %s146
      %p157 = scmp.eq.s32.totalorder %s36, 0
      %p158 = por %p156, %p157
      %p159 = scmp.ne.s32.totalorder %s145, %s146
      %p160 = scmp.eq.s32.totalorder %s37, 3
      %p161 = por %p159, %p160
      %p163 = scmp.ne.s32.totalorder %s146, %s162
      %p164 = scmp.eq.s32.totalorder %s37, 0
      %p165 = por %p163, %p164
      %s166 = ssub.s32 %s39, %s46
      %p167 = scmp.eq.s32.totalorder %s166, 0
      %s169 = sadd.s32 %s168, 1
      %s170 = scalar_select %p167, %s168, %s169
      %p173 = pneg %p167
      %p174 = scmp.eq.s32.totalorder %s31, 3
      %p175 = por %p173, %p174
      %p176 = scmp.ne.s32.totalorder %s168, %s171
      %p177 = scmp.eq.s32.totalorder %s31, 0
      %p178 = por %p176, %p177
      %p179 = scmp.ne.s32.totalorder %s168, %s171
      %p180 = scmp.eq.s32.totalorder %s36, 3
      %p181 = por %p179, %p180
      %p182 = scmp.ne.s32.totalorder %s171, %s172
      %p183 = scmp.eq.s32.totalorder %s36, 0
      %p184 = por %p182, %p183
      %p185 = scmp.ne.s32.totalorder %s171, %s172
      %p186 = scmp.eq.s32.totalorder %s37, 3
      %p187 = por %p185, %p186
      %p189 = scmp.ne.s32.totalorder %s172, %s188
      %p190 = scmp.eq.s32.totalorder %s37, 0
      %p191 = por %p189, %p190
      %s192 = ssub.s32 %s39, %s46
      %p193 = scmp.eq.s32.totalorder %s192, 0
      %s195 = sadd.s32 %s194, 1
      %s196 = scalar_select %p193, %s194, %s195
      %p199 = pneg %p193
      %p200 = scmp.eq.s32.totalorder %s31, 3
      %p201 = por %p199, %p200
      %p202 = scmp.ne.s32.totalorder %s194, %s197
      %p203 = scmp.eq.s32.totalorder %s31, 0
      %p204 = por %p202, %p203
      %p205 = scmp.ne.s32.totalorder %s194, %s197
      %p206 = scmp.eq.s32.totalorder %s36, 3
      %p207 = por %p205, %p206
      %p208 = scmp.ne.s32.totalorder %s197, %s198
      %p209 = scmp.eq.s32.totalorder %s36, 0
      %p210 = por %p208, %p209
      %p211 = scmp.ne.s32.totalorder %s197, %s198
      %p212 = scmp.eq.s32.totalorder %s37, 3
      %p213 = por %p211, %p212
      %p215 = scmp.ne.s32.totalorder %s198, %s214
      %p216 = scmp.eq.s32.totalorder %s37, 0
      %p217 = por %p215, %p216
      %s218 = ssub.s32 %s39, %s46
      %p219 = scmp.eq.s32.totalorder %s218, 0
      %s221 = sadd.s32 %s220, 1
      %s222 = scalar_select %p219, %s220, %s221
      %p225 = pneg %p219
      %p226 = scmp.eq.s32.totalorder %s31, 3
      %p227 = por %p225, %p226
      %p228 = scmp.ne.s32.totalorder %s220, %s223
      %p229 = scmp.eq.s32.totalorder %s31, 0
      %p230 = por %p228, %p229
      %p231 = scmp.ne.s32.totalorder %s220, %s223
      %p232 = scmp.eq.s32.totalorder %s36, 3
      %p233 = por %p231, %p232
      %p234 = scmp.ne.s32.totalorder %s223, %s224
      %p235 = scmp.eq.s32.totalorder %s36, 0
      %p236 = por %p234, %p235
      %p237 = scmp.ne.s32.totalorder %s223, %s224
      %p238 = scmp.eq.s32.totalorder %s37, 3
      %p239 = por %p237, %p238
      %p241 = scmp.ne.s32.totalorder %s224, %s240
      %p242 = scmp.eq.s32.totalorder %s37, 0
      %p243 = por %p241, %p242
      %s244 = ssub.s32 %s39, %s46
      %p245 = scmp.eq.s32.totalorder %s244, 0
      %s247 = sadd.s32 %s246, 1
      %s248 = scalar_select %p245, %s246, %s247
      %p251 = pneg %p245
      %p252 = scmp.eq.s32.totalorder %s31, 3
      %p253 = por %p251, %p252
      %p254 = scmp.ne.s32.totalorder %s246, %s249
      %p255 = scmp.eq.s32.totalorder %s31, 0
      %p256 = por %p254, %p255
      %p257 = scmp.ne.s32.totalorder %s246, %s249
      %p258 = scmp.eq.s32.totalorder %s36, 3
      %p259 = por %p257, %p258
      %p260 = scmp.ne.s32.totalorder %s249, %s250
      %p261 = scmp.eq.s32.totalorder %s36, 0
      %p262 = por %p260, %p261
      %p263 = scmp.ne.s32.totalorder %s249, %s250
      %p264 = scmp.eq.s32.totalorder %s37, 3
      %p265 = por %p263, %p264
      %p267 = scmp.ne.s32.totalorder %s250, %s266
      %p268 = scmp.eq.s32.totalorder %s37, 0
      %p269 = por %p267, %p268
      %s270 = ssub.s32 %s39, %s46
      %p271 = scmp.eq.s32.totalorder %s270, 0
      %s273 = sadd.s32 %s272, 1
      %s274 = scalar_select %p271, %s272, %s273
      %p277 = pneg %p271
      %p278 = scmp.eq.s32.totalorder %s31, 3
      %p279 = por %p277, %p278
      %p280 = scmp.ne.s32.totalorder %s272, %s275
      %p281 = scmp.eq.s32.totalorder %s31, 0
      %p282 = por %p280, %p281
      %p283 = scmp.ne.s32.totalorder %s272, %s275
      %p284 = scmp.eq.s32.totalorder %s36, 3
      %p285 = por %p283, %p284
      %p286 = scmp.ne.s32.totalorder %s275, %s276
      %p287 = scmp.eq.s32.totalorder %s36, 0
      %p288 = por %p286, %p287
      %p289 = scmp.ne.s32.totalorder %s275, %s276
      %p290 = scmp.eq.s32.totalorder %s37, 3
      %p291 = por %p289, %p290
      %p293 = scmp.ne.s32.totalorder %s276, %s292
      %p294 = scmp.eq.s32.totalorder %s37, 0
      %p295 = por %p293, %p294
      %s296 = ssub.s32 %s39, %s46
      %p297 = scmp.eq.s32.totalorder %s296, 0
      %s299 = sadd.s32 %s298, 1
      %s300 = scalar_select %p297, %s298, %s299
      %p303 = pneg %p297
      %p304 = scmp.eq.s32.totalorder %s31, 3
      %p305 = por %p303, %p304
      %p306 = scmp.ne.s32.totalorder %s298, %s301
      %p307 = scmp.eq.s32.totalorder %s31, 0
      %p308 = por %p306, %p307
      %p309 = scmp.ne.s32.totalorder %s298, %s301
      %p310 = scmp.eq.s32.totalorder %s36, 3
      %p311 = por %p309, %p310
      %p312 = scmp.ne.s32.totalorder %s301, %s302
      %p313 = scmp.eq.s32.totalorder %s36, 0
      %p314 = por %p312, %p313
      %p315 = scmp.ne.s32.totalorder %s301, %s302
      %p316 = scmp.eq.s32.totalorder %s37, 3
      %p317 = por %p315, %p316
      %p319 = scmp.ne.s32.totalorder %s302, %s318
      %p320 = scmp.eq.s32.totalorder %s37, 0
      %p321 = por %p319, %p320
      %s322 = ssub.s32 %s39, %s46
      %p323 = scmp.eq.s32.totalorder %s322, 0
      %s325 = sadd.s32 %s324, 1
      %s326 = scalar_select %p323, %s324, %s325
      %p329 = pneg %p323
      %p330 = scmp.eq.s32.totalorder %s31, 3
      %p331 = por %p329, %p330
      %p332 = scmp.ne.s32.totalorder %s324, %s327
      %p333 = scmp.eq.s32.totalorder %s31, 0
      %p334 = por %p332, %p333
      %p335 = scmp.ne.s32.totalorder %s324, %s327
      %p336 = scmp.eq.s32.totalorder %s36, 3
      %p337 = por %p335, %p336
      %p338 = scmp.ne.s32.totalorder %s327, %s328
      %p339 = scmp.eq.s32.totalorder %s36, 0
      %p340 = por %p338, %p339
      %p341 = scmp.ne.s32.totalorder %s327, %s328
      %p342 = scmp.eq.s32.totalorder %s37, 3
      %p343 = por %p341, %p342
      %p345 = scmp.ne.s32.totalorder %s328, %s344
      %p346 = scmp.eq.s32.totalorder %s37, 0
      %p347 = por %p345, %p346
      %s348 = ssub.s32 %s39, %s46
      %p349 = scmp.eq.s32.totalorder %s348, 0
      %s351 = sadd.s32 %s350, 1
      %s352 = scalar_select %p349, %s350, %s351
      %p355 = pneg %p349
      %p356 = scmp.eq.s32.totalorder %s31, 3
      %p357 = por %p355, %p356
      %p358 = scmp.ne.s32.totalorder %s350, %s353
      %p359 = scmp.eq.s32.totalorder %s31, 0
      %p360 = por %p358, %p359
      %p361 = scmp.ne.s32.totalorder %s350, %s353
      %p362 = scmp.eq.s32.totalorder %s36, 3
      %p363 = por %p361, %p362
      %p364 = scmp.ne.s32.totalorder %s353, %s354
      %p365 = scmp.eq.s32.totalorder %s36, 0
      %p366 = por %p364, %p365
      %p367 = scmp.ne.s32.totalorder %s353, %s354
      %p368 = scmp.eq.s32.totalorder %s37, 3
      %p369 = por %p367, %p368
      %p371 = scmp.ne.s32.totalorder %s354, %s370
      %p372 = scmp.eq.s32.totalorder %s37, 0
      %p373 = por %p371, %p372
      %s374 = ssub.s32 %s39, %s46
      %p375 = scmp.eq.s32.totalorder %s374, 0
      %s377 = sadd.s32 %s376, 1
      %s378 = scalar_select %p375, %s376, %s377
      %p381 = pneg %p375
      %p382 = scmp.eq.s32.totalorder %s31, 3
      %p383 = por %p381, %p382
      %p384 = scmp.ne.s32.totalorder %s376, %s379
      %p385 = scmp.eq.s32.totalorder %s31, 0
      %p386 = por %p384, %p385
      %p387 = scmp.ne.s32.totalorder %s376, %s379
      %p388 = scmp.eq.s32.totalorder %s36, 3
      %p389 = por %p387, %p388
      %p390 = scmp.ne.s32.totalorder %s379, %s380
      %p391 = scmp.eq.s32.totalorder %s36, 0
      %p392 = por %p390, %p391
      %p393 = scmp.ne.s32.totalorder %s379, %s380
      %p394 = scmp.eq.s32.totalorder %s37, 3
      %p395 = por %p393, %p394
      %p397 = scmp.ne.s32.totalorder %s380, %s396
      %p398 = scmp.eq.s32.totalorder %s37, 0
      %p399 = por %p397, %p398
      %s400 = ssub.s32 %s39, %s46
      %p401 = scmp.eq.s32.totalorder %s400, 0
      %s403 = sadd.s32 %s402, 1
      %s404 = scalar_select %p401, %s402, %s403
      %p407 = pneg %p401
      %p408 = scmp.eq.s32.totalorder %s31, 3
      %p409 = por %p407, %p408
      %p410 = scmp.ne.s32.totalorder %s402, %s405
      %p411 = scmp.eq.s32.totalorder %s31, 0
      %p412 = por %p410, %p411
      %p413 = scmp.ne.s32.totalorder %s402, %s405
      %p414 = scmp.eq.s32.totalorder %s36, 3
      %p415 = por %p413, %p414
      %p416 = scmp.ne.s32.totalorder %s405, %s406
      %p417 = scmp.eq.s32.totalorder %s36, 0
      %p418 = por %p416, %p417
      %p419 = scmp.ne.s32.totalorder %s405, %s406
      %p420 = scmp.eq.s32.totalorder %s37, 3
      %p421 = por %p419, %p420
      %p423 = scmp.ne.s32.totalorder %s406, %s422
      %p424 = scmp.eq.s32.totalorder %s37, 0
      %p425 = por %p423, %p424
      %s426 = ssub.s32 %s39, %s46
      %p427 = scmp.eq.s32.totalorder %s426, 0
      %s429 = sadd.s32 %s428, 1
      %s430 = scalar_select %p427, %s428, %s429
      %p433 = pneg %p427
      %p434 = scmp.eq.s32.totalorder %s31, 3
      %p435 = por %p433, %p434
      %p436 = scmp.ne.s32.totalorder %s428, %s431
      %p437 = scmp.eq.s32.totalorder %s31, 0
      %p438 = por %p436, %p437
      %p439 = scmp.ne.s32.totalorder %s428, %s431
      %p440 = scmp.eq.s32.totalorder %s36, 3
      %p441 = por %p439, %p440
      %p442 = scmp.ne.s32.totalorder %s431, %s432
      %p443 = scmp.eq.s32.totalorder %s36, 0
      %p444 = por %p442, %p443
      %p445 = scmp.ne.s32.totalorder %s431, %s432
      %p446 = scmp.eq.s32.totalorder %s37, 3
      %p447 = por %p445, %p446
      %p449 = scmp.ne.s32.totalorder %s432, %s448
      %p450 = scmp.eq.s32.totalorder %s37, 0
      %p451 = por %p449, %p450
      %s452 = ssub.s32 %s39, %s46
      %p453 = scmp.eq.s32.totalorder %s452, 0
      %s455 = sadd.s32 %s454, 1
      %s456 = scalar_select %p453, %s454, %s455
      %p459 = pneg %p453
      %p460 = scmp.eq.s32.totalorder %s31, 3
      %p461 = por %p459, %p460
      %p462 = scmp.ne.s32.totalorder %s454, %s457
      %p463 = scmp.eq.s32.totalorder %s31, 0
      %p464 = por %p462, %p463
      %p465 = scmp.ne.s32.totalorder %s454, %s457
      %p466 = scmp.eq.s32.totalorder %s36, 3
      %p467 = por %p465, %p466
      %p468 = scmp.ne.s32.totalorder %s457, %s458
      %p469 = scmp.eq.s32.totalorder %s36, 0
      %p470 = por %p468, %p469
      %p471 = scmp.ne.s32.totalorder %s457, %s458
      %p472 = scmp.eq.s32.totalorder %s37, 3
      %p473 = por %p471, %p472
      %p475 = scmp.ne.s32.totalorder %s458, %s474
      %p476 = scmp.eq.s32.totalorder %s37, 0
      %p477 = por %p475, %p476
      %s478 = ssub.s32 %s39, %s46
      %p479 = scmp.eq.s32.totalorder %s478, 0
      %s481 = sadd.s32 %s480, 1
      %s482 = scalar_select %p479, %s480, %s481
      %p485 = pneg %p479
      %p486 = scmp.eq.s32.totalorder %s31, 3
      %p487 = por %p485, %p486
      %p488 = scmp.ne.s32.totalorder %s480, %s483
      %p489 = scmp.eq.s32.totalorder %s31, 0
      %p490 = por %p488, %p489
      %p491 = scmp.ne.s32.totalorder %s480, %s483
      %p492 = scmp.eq.s32.totalorder %s36, 3
      %p493 = por %p491, %p492
      %p494 = scmp.ne.s32.totalorder %s483, %s484
      %p495 = scmp.eq.s32.totalorder %s36, 0
      %p496 = por %p494, %p495
      %p497 = scmp.ne.s32.totalorder %s483, %s484
      %p498 = scmp.eq.s32.totalorder %s37, 3
      %p499 = por %p497, %p498
      %p501 = scmp.ne.s32.totalorder %s484, %s500
      %p502 = scmp.eq.s32.totalorder %s37, 0
      %p503 = por %p501, %p502
      %s504 = ssub.s32 %s39, %s46
      %p505 = scmp.eq.s32.totalorder %s504, 0
      %s507 = sadd.s32 %s506, 1
      %s508 = scalar_select %p505, %s506, %s507
      %p511 = pneg %p505
      %p512 = scmp.eq.s32.totalorder %s31, 3
      %p513 = por %p511, %p512
      %p514 = scmp.ne.s32.totalorder %s506, %s509
      %p515 = scmp.eq.s32.totalorder %s31, 0
      %p516 = por %p514, %p515
      %p517 = scmp.ne.s32.totalorder %s506, %s509
      %p518 = scmp.eq.s32.totalorder %s36, 3
      %p519 = por %p517, %p518
      %p520 = scmp.ne.s32.totalorder %s509, %s510
      %p521 = scmp.eq.s32.totalorder %s36, 0
      %p522 = por %p520, %p521
      %p523 = scmp.ne.s32.totalorder %s509, %s510
      %p524 = scmp.eq.s32.totalorder %s37, 3
      %p525 = por %p523, %p524
      %p527 = scmp.ne.s32.totalorder %s510, %s526
      %p528 = scmp.eq.s32.totalorder %s37, 0
      %p529 = por %p527, %p528
      %s530 = ssub.s32 %s39, %s46
      %p531 = scmp.eq.s32.totalorder %s530, 0
      %s533 = sadd.s32 %s532, 1
      %s534 = scalar_select %p531, %s532, %s533
      %p537 = pneg %p531
      %p538 = scmp.eq.s32.totalorder %s31, 3
      %p539 = por %p537, %p538
      %p540 = scmp.ne.s32.totalorder %s532, %s535
      %p541 = scmp.eq.s32.totalorder %s31, 0
      %p542 = por %p540, %p541
      %p543 = scmp.ne.s32.totalorder %s532, %s535
      %p544 = scmp.eq.s32.totalorder %s36, 3
      %p545 = por %p543, %p544
      %p546 = scmp.ne.s32.totalorder %s535, %s536
      %p547 = scmp.eq.s32.totalorder %s36, 0
      %p548 = por %p546, %p547
      %p549 = scmp.ne.s32.totalorder %s535, %s536
      %p550 = scmp.eq.s32.totalorder %s37, 3
      %p551 = por %p549, %p550
      %p553 = scmp.ne.s32.totalorder %s536, %s552
      %p554 = scmp.eq.s32.totalorder %s37, 0
      %p555 = por %p553, %p554
      %s557 = sadd.s32 %s556, 1
      %p560 = scmp.eq.s32.totalorder %s31, 3
      %p561 = scmp.ne.s32.totalorder %s556, %s558
      %p562 = scmp.eq.s32.totalorder %s31, 0
      %p563 = por %p561, %p562
      %p564 = scmp.ne.s32.totalorder %s556, %s558
      %p565 = scmp.eq.s32.totalorder %s36, 3
      %p566 = por %p564, %p565
      %p567 = scmp.ne.s32.totalorder %s558, %s559
      %p568 = scmp.eq.s32.totalorder %s36, 0
      %p569 = por %p567, %p568
      %p570 = scmp.ne.s32.totalorder %s558, %s559
      %p571 = scmp.eq.s32.totalorder %s37, 3
      %p572 = por %p570, %p571
      %p574 = scmp.ne.s32.totalorder %s559, %s573
      %p575 = scmp.eq.s32.totalorder %s37, 0
      %p576 = por %p574, %p575
      %s578 = sadd.s32 %s577, 1
      %p581 = scmp.eq.s32.totalorder %s31, 3
      %p582 = scmp.ne.s32.totalorder %s577, %s579
      %p583 = scmp.eq.s32.totalorder %s31, 0
      %p584 = por %p582, %p583
      %p585 = scmp.ne.s32.totalorder %s577, %s579
      %p586 = scmp.eq.s32.totalorder %s36, 3
      %p587 = por %p585, %p586
      %p588 = scmp.ne.s32.totalorder %s579, %s580
      %p589 = scmp.eq.s32.totalorder %s36, 0
      %p590 = por %p588, %p589
      %p591 = scmp.ne.s32.totalorder %s579, %s580
      %p592 = scmp.eq.s32.totalorder %s37, 3
      %p593 = por %p591, %p592
      %p595 = scmp.ne.s32.totalorder %s580, %s594
      %p596 = scmp.eq.s32.totalorder %s37, 0
      %p597 = por %p595, %p596
      %s598 = ssub.s32 %s38, %s50
      %p599 = scmp.eq.s32.totalorder %s598, 0
      %s601 = sadd.s32 %s600, 1
      %s602 = scalar_select %p599, %s600, %s601
      %p605 = pneg %p599
      %p606 = scmp.eq.s32.totalorder %s31, 3
      %p607 = por %p605, %p606
      %p608 = scmp.ne.s32.totalorder %s600, %s603
      %p609 = scmp.eq.s32.totalorder %s31, 0
      %p610 = por %p608, %p609
      %p611 = scmp.ne.s32.totalorder %s600, %s603
      %p612 = scmp.eq.s32.totalorder %s36, 3
      %p613 = por %p611, %p612
      %p614 = scmp.ne.s32.totalorder %s603, %s604
      %p615 = scmp.eq.s32.totalorder %s36, 0
      %p616 = por %p614, %p615
      %p617 = scmp.ne.s32.totalorder %s603, %s604
      %p618 = scmp.eq.s32.totalorder %s37, 3
      %p619 = por %p617, %p618
      %p621 = scmp.ne.s32.totalorder %s604, %s620
      %p622 = scmp.eq.s32.totalorder %s37, 0
      %p623 = por %p621, %p622
      %p624 = scmp.le.s32.totalorder 1, %s31
      %p625 = scmp.lt.s32.totalorder %s31, 5
      %p626 = pnand %p624, %p625
      %p627 = pneg %p626
      // Predicated region
      $region9: #{siglip_vision_model.1} parent=5 // pred_check
        _
      $region10: #{siglip_vision_model.1} parent=5 // pred_check_branch
        %629 = sbr.rel (%p626) target = $region12
      $region11: #{siglip_vision_model.1} parent=5 // pred_region
        %s630 = ssub.s32 %s31, 1
        // Predicated region
        $region13: #{siglip_vision_model.1} parent=11 // pred_check
          %p631 = pneg %p90
        $region14: #{siglip_vision_model.1} parent=11 // pred_check_branch
          %633 = sbr.rel (%p631) target = $region16
        $region15: #{siglip_vision_model.1} parent=11 // pred_region
          _
        $region16: #{siglip_vision_model.1} parent=11 // pred_fallthru
          _
        // Predicated region
        $region17: #{siglip_vision_model.1} parent=11 // pred_check
          %p634 = pneg %p111
        $region18: #{siglip_vision_model.1} parent=11 // pred_check_branch
          %636 = sbr.rel (%p634) target = $region20
        $region19: #{siglip_vision_model.1} parent=11 // pred_region
          _
        $region20: #{siglip_vision_model.1} parent=11 // pred_fallthru
          _
        // Predicated region
        $region21: #{siglip_vision_model.1} parent=11 // pred_check
          %p637 = pneg %p132
        $region22: #{siglip_vision_model.1} parent=11 // pred_check_branch
          %639 = sbr.rel (%p637) target = $region24
        $region23: #{siglip_vision_model.1} parent=11 // pred_region
          _
        $region24: #{siglip_vision_model.1} parent=11 // pred_fallthru
          _
        // Predicated region
        $region25: #{siglip_vision_model.1} parent=11 // pred_check
          %p640 = pneg %p569
        $region26: #{siglip_vision_model.1} parent=11 // pred_check_branch
          %642 = sbr.rel (%p640) target = $region28
        $region27: #{siglip_vision_model.1} parent=11 // pred_region
          _
        $region28: #{siglip_vision_model.1} parent=11 // pred_fallthru
          _
        // Predicated region
        $region29: #{siglip_vision_model.1} parent=11 // pred_check
          %p643 = pneg %p590
        $region30: #{siglip_vision_model.1} parent=11 // pred_check_branch
          %645 = sbr.rel (%p643) target = $region32
        $region31: #{siglip_vision_model.1} parent=11 // pred_region
          _
        $region32: #{siglip_vision_model.1} parent=11 // pred_fallthru
          _
      $region12: #{siglip_vision_model.1} parent=5 // pred_fallthru
        _
      %p646 = scmp.lt.s32.totalorder %s31, 4
      // Predicated region
      $region33: #{siglip_vision_model.1} parent=5 // pred_check
        %p647 = pneg %p646
      $region34: #{siglip_vision_model.1} parent=5 // pred_check_branch
        %649 = sbr.rel (%p647) target = $region36
      $region35: #{siglip_vision_model.1} parent=5 // pred_region
        // Predicated region
        $region37: #{siglip_vision_model.1} parent=35 // pred_check
          %p650 = pneg %p63
        $region38: #{siglip_vision_model.1} parent=35 // pred_check_branch
          %652 = sbr.rel (%p650) target = $region40
        $region39: #{siglip_vision_model.1} parent=35 // pred_region
          %p653 = scmp.lt.s32.totalorder %s38, 1
          %s654 = scalar_select %p653, %s38, 1
          %s655 = smul.addr %s654, 2
          %s656 = smul.addr %s655, 4
          %s657 = scalar_lea.vmem %s0, %s656
        $region40: #{siglip_vision_model.1} parent=35 // pred_fallthru
          _
        // Predicated region
        $region41: #{siglip_vision_model.1} parent=35 // pred_check
          %p658 = pneg %p152
        $region42: #{siglip_vision_model.1} parent=35 // pred_check_branch
          %660 = sbr.rel (%p658) target = $region44
        $region43: #{siglip_vision_model.1} parent=35 // pred_region
          %p661 = scmp.lt.s32.totalorder %s39, 1
          %s662 = scalar_select %p661, %s39, 1
          %s663 = scalar_lea.vmem %s4, %s662
        $region44: #{siglip_vision_model.1} parent=35 // pred_fallthru
          _
        // Predicated region
        $region45: #{siglip_vision_model.1} parent=35 // pred_check
          %p664 = pneg %p178
        $region46: #{siglip_vision_model.1} parent=35 // pred_check_branch
          %666 = sbr.rel (%p664) target = $region48
        $region47: #{siglip_vision_model.1} parent=35 // pred_region
          %p667 = scmp.lt.s32.totalorder %s39, 1
          %s668 = scalar_select %p667, %s39, 1
          %s669 = scalar_lea.vmem %s5, %s668
        $region48: #{siglip_vision_model.1} parent=35 // pred_fallthru
          _
        // Predicated region
        $region49: #{siglip_vision_model.1} parent=35 // pred_check
          %p670 = pneg %p204
        $region50: #{siglip_vision_model.1} parent=35 // pred_check_branch
          %672 = sbr.rel (%p670) target = $region52
        $region51: #{siglip_vision_model.1} parent=35 // pred_region
          %p673 = scmp.lt.s32.totalorder %s39, 1
          %s674 = scalar_select %p673, %s39, 1
          %s675 = smul.addr %s674, 4
          %s676 = smul.addr %s675, 4
          %s677 = scalar_lea.vmem %s6, %s676
        $region52: #{siglip_vision_model.1} parent=35 // pred_fallthru
          _
        // Predicated region
        $region53: #{siglip_vision_model.1} parent=35 // pred_check
          %p678 = pneg %p230
        $region54: #{siglip_vision_model.1} parent=35 // pred_check_branch
          %680 = sbr.rel (%p678) target = $region56
        $region55: #{siglip_vision_model.1} parent=35 // pred_region
          %p681 = scmp.lt.s32.totalorder %s39, 1
          %s682 = scalar_select %p681, %s39, 1
          %s683 = scalar_lea.vmem %s7, %s682
        $region56: #{siglip_vision_model.1} parent=35 // pred_fallthru
          _
        // Predicated region
        $region57: #{siglip_vision_model.1} parent=35 // pred_check
          %p684 = pneg %p256
        $region58: #{siglip_vision_model.1} parent=35 // pred_check_branch
          %686 = sbr.rel (%p684) target = $region60
        $region59: #{siglip_vision_model.1} parent=35 // pred_region
          %p687 = scmp.lt.s32.totalorder %s39, 1
          %s688 = scalar_select %p687, %s39, 1
          %s689 = smul.addr %s688, 4
          %s690 = smul.addr %s689, 4
          %s691 = scalar_lea.vmem %s8, %s690
        $region60: #{siglip_vision_model.1} parent=35 // pred_fallthru
          _
        // Predicated region
        $region61: #{siglip_vision_model.1} parent=35 // pred_check
          %p692 = pneg %p282
        $region62: #{siglip_vision_model.1} parent=35 // pred_check_branch
          %694 = sbr.rel (%p692) target = $region64
        $region63: #{siglip_vision_model.1} parent=35 // pred_region
          %p695 = scmp.lt.s32.totalorder %s39, 1
          %s696 = scalar_select %p695, %s39, 1
          %s697 = scalar_lea.vmem %s9, %s696
        $region64: #{siglip_vision_model.1} parent=35 // pred_fallthru
          _
        // Predicated region
        $region65: #{siglip_vision_model.1} parent=35 // pred_check
          %p698 = pneg %p308
        $region66: #{siglip_vision_model.1} parent=35 // pred_check_branch
          %700 = sbr.rel (%p698) target = $region68
        $region67: #{siglip_vision_model.1} parent=35 // pred_region
          %p701 = scmp.lt.s32.totalorder %s39, 1
          %s702 = scalar_select %p701, %s39, 1
          %s703 = smul.addr %s702, 4
          %s704 = smul.addr %s703, 4
          %s705 = scalar_lea.vmem %s10, %s704
        $region68: #{siglip_vision_model.1} parent=35 // pred_fallthru
          _
        // Predicated region
        $region69: #{siglip_vision_model.1} parent=35 // pred_check
          %p706 = pneg %p334
        $region70: #{siglip_vision_model.1} parent=35 // pred_check_branch
          %708 = sbr.rel (%p706) target = $region72
        $region71: #{siglip_vision_model.1} parent=35 // pred_region
          %p709 = scmp.lt.s32.totalorder %s39, 1
          %s710 = scalar_select %p709, %s39, 1
          %s711 = scalar_lea.vmem %s11, %s710
        $region72: #{siglip_vision_model.1} parent=35 // pred_fallthru
          _
        // Predicated region
        $region73: #{siglip_vision_model.1} parent=35 // pred_check
          %p712 = pneg %p360
        $region74: #{siglip_vision_model.1} parent=35 // pred_check_branch
          %714 = sbr.rel (%p712) target = $region76
        $region75: #{siglip_vision_model.1} parent=35 // pred_region
          %p715 = scmp.lt.s32.totalorder %s39, 1
          %s716 = scalar_select %p715, %s39, 1
          %s717 = smul.addr %s716, 4
          %s718 = smul.addr %s717, 4
          %s719 = scalar_lea.vmem %s12, %s718
        $region76: #{siglip_vision_model.1} parent=35 // pred_fallthru
          _
        // Predicated region
        $region77: #{siglip_vision_model.1} parent=35 // pred_check
          %p720 = pneg %p386
        $region78: #{siglip_vision_model.1} parent=35 // pred_check_branch
          %722 = sbr.rel (%p720) target = $region80
        $region79: #{siglip_vision_model.1} parent=35 // pred_region
          %p723 = scmp.lt.s32.totalorder %s39, 1
          %s724 = scalar_select %p723, %s39, 1
          %s725 = scalar_lea.vmem %s13, %s724
        $region80: #{siglip_vision_model.1} parent=35 // pred_fallthru
          _
        // Predicated region
        $region81: #{siglip_vision_model.1} parent=35 // pred_check
          %p726 = pneg %p412
        $region82: #{siglip_vision_model.1} parent=35 // pred_check_branch
          %728 = sbr.rel (%p726) target = $region84
        $region83: #{siglip_vision_model.1} parent=35 // pred_region
          %p729 = scmp.lt.s32.totalorder %s39, 1
          %s730 = scalar_select %p729, %s39, 1
          %s731 = scalar_lea.vmem %s14, %s730
        $region84: #{siglip_vision_model.1} parent=35 // pred_fallthru
          _
        // Predicated region
        $region85: #{siglip_vision_model.1} parent=35 // pred_check
          %p732 = pneg %p438
        $region86: #{siglip_vision_model.1} parent=35 // pred_check_branch
          %734 = sbr.rel (%p732) target = $region88
        $region87: #{siglip_vision_model.1} parent=35 // pred_region
          %p735 = scmp.lt.s32.totalorder %s39, 1
          %s736 = scalar_select %p735, %s39, 1
          %s737 = scalar_lea.vmem %s15, %s736
        $region88: #{siglip_vision_model.1} parent=35 // pred_fallthru
          _
        // Predicated region
        $region89: #{siglip_vision_model.1} parent=35 // pred_check
          %p738 = pneg %p464
        $region90: #{siglip_vision_model.1} parent=35 // pred_check_branch
          %740 = sbr.rel (%p738) target = $region92
        $region91: #{siglip_vision_model.1} parent=35 // pred_region
          %p741 = scmp.lt.s32.totalorder %s39, 1
          %s742 = scalar_select %p741, %s39, 1
          %s743 = smul.addr %s742, 4
          %s744 = smul.addr %s743, 4
          %s745 = scalar_lea.vmem %s16, %s744
        $region92: #{siglip_vision_model.1} parent=35 // pred_fallthru
          _
        // Predicated region
        $region93: #{siglip_vision_model.1} parent=35 // pred_check
          %p746 = pneg %p490
        $region94: #{siglip_vision_model.1} parent=35 // pred_check_branch
          %748 = sbr.rel (%p746) target = $region96
        $region95: #{siglip_vision_model.1} parent=35 // pred_region
          %p749 = scmp.lt.s32.totalorder %s39, 1
          %s750 = scalar_select %p749, %s39, 1
          %s751 = scalar_lea.vmem %s17, %s750
        $region96: #{siglip_vision_model.1} parent=35 // pred_fallthru
          _
        // Predicated region
        $region97: #{siglip_vision_model.1} parent=35 // pred_check
          %p752 = pneg %p516
        $region98: #{siglip_vision_model.1} parent=35 // pred_check_branch
          %754 = sbr.rel (%p752) target = $region100
        $region99: #{siglip_vision_model.1} parent=35 // pred_region
          %p755 = scmp.lt.s32.totalorder %s39, 1
          %s756 = scalar_select %p755, %s39, 1
          %s757 = smul.addr %s756, 8
          %s758 = smul.addr %s757, 4
          %s759 = scalar_lea.vmem %s18, %s758
        $region100: #{siglip_vision_model.1} parent=35 // pred_fallthru
          _
        // Predicated region
        $region101: #{siglip_vision_model.1} parent=35 // pred_check
          %p760 = pneg %p542
        $region102: #{siglip_vision_model.1} parent=35 // pred_check_branch
          %762 = sbr.rel (%p760) target = $region104
        $region103: #{siglip_vision_model.1} parent=35 // pred_region
          %p763 = scmp.lt.s32.totalorder %s39, 1
          %s764 = scalar_select %p763, %s39, 1
          %s765 = scalar_lea.vmem %s19, %s764
        $region104: #{siglip_vision_model.1} parent=35 // pred_fallthru
          _
      $region36: #{siglip_vision_model.1} parent=5 // pred_fallthru
        _
      %p766 = scmp.le.s32.totalorder 1, %s31
      %p767 = scmp.lt.s32.totalorder %s31, 5
      %p768 = pnand %p766, %p767
      %p769 = pneg %p768
      // Predicated region
      $region105: #{siglip_vision_model.1} parent=5 // pred_check
        _
      $region106: #{siglip_vision_model.1} parent=5 // pred_check_branch
        %771 = sbr.rel (%p768) target = $region108
      $region107: #{siglip_vision_model.1} parent=5 // pred_region
        %s772 = ssub.s32 %s31, 1
        %p773 = scmp.lt.s32.totalorder %s40, 1
        %s774 = scalar_select %p773, %s40, 1
        %s775 = smul.addr %s774, 2
        %s776 = smul.addr %s775, 4
        %s777 = scalar_lea.vmem %s0, %s776
        %p778 = pneg %p69
        %p779 = pneg %p66
        %p780 = pneg %p90
        %p781 = pneg %p87
        %p782 = pneg %p111
        %p783 = pneg %p108
        %p784 = pneg %p132
        %p785 = pneg %p129
        %p786 = scmp.lt.s32.totalorder %s41, 1
        %s787 = scalar_select %p786, %s41, 1
        %s788 = scalar_lea.vmem %s4, %s787
        %p789 = pneg %p158
        %p790 = pneg %p155
        %p791 = scmp.lt.s32.totalorder %s41, 1
        %s792 = scalar_select %p791, %s41, 1
        %s793 = scalar_lea.vmem %s5, %s792
        %p794 = pneg %p184
        %p795 = pneg %p181
        %p796 = scmp.lt.s32.totalorder %s41, 1
        %s797 = scalar_select %p796, %s41, 1
        %s798 = smul.addr %s797, 4
        %s799 = smul.addr %s798, 4
        %s800 = scalar_lea.vmem %s6, %s799
        %p801 = pneg %p210
        %p802 = pneg %p207
        %p803 = scmp.lt.s32.totalorder %s41, 1
        %s804 = scalar_select %p803, %s41, 1
        %s805 = scalar_lea.vmem %s7, %s804
        %p806 = pneg %p236
        %p807 = pneg %p233
        %p808 = scmp.lt.s32.totalorder %s41, 1
        %s809 = scalar_select %p808, %s41, 1
        %s810 = smul.addr %s809, 4
        %s811 = smul.addr %s810, 4
        %s812 = scalar_lea.vmem %s8, %s811
        %p813 = pneg %p262
        %p814 = pneg %p259
        %p815 = scmp.lt.s32.totalorder %s41, 1
        %s816 = scalar_select %p815, %s41, 1
        %s817 = scalar_lea.vmem %s9, %s816
        %p818 = pneg %p288
        %p819 = pneg %p285
        %p820 = scmp.lt.s32.totalorder %s41, 1
        %s821 = scalar_select %p820, %s41, 1
        %s822 = smul.addr %s821, 4
        %s823 = smul.addr %s822, 4
        %s824 = scalar_lea.vmem %s10, %s823
        %p825 = pneg %p314
        %p826 = pneg %p311
        %p827 = scmp.lt.s32.totalorder %s41, 1
        %s828 = scalar_select %p827, %s41, 1
        %s829 = scalar_lea.vmem %s11, %s828
        %p830 = pneg %p340
        %p831 = pneg %p337
        %p832 = scmp.lt.s32.totalorder %s41, 1
        %s833 = scalar_select %p832, %s41, 1
        %s834 = smul.addr %s833, 4
        %s835 = smul.addr %s834, 4
        %s836 = scalar_lea.vmem %s12, %s835
        %p837 = pneg %p366
        %p838 = pneg %p363
        %p839 = scmp.lt.s32.totalorder %s41, 1
        %s840 = scalar_select %p839, %s41, 1
        %s841 = scalar_lea.vmem %s13, %s840
        %p842 = pneg %p392
        %p843 = pneg %p389
        %p844 = scmp.lt.s32.totalorder %s41, 1
        %s845 = scalar_select %p844, %s41, 1
        %s846 = scalar_lea.vmem %s14, %s845
        %p847 = pneg %p418
        %p848 = pneg %p415
        %p849 = scmp.lt.s32.totalorder %s41, 1
        %s850 = scalar_select %p849, %s41, 1
        %s851 = scalar_lea.vmem %s15, %s850
        %p852 = pneg %p444
        %p853 = pneg %p441
        %p854 = scmp.lt.s32.totalorder %s41, 1
        %s855 = scalar_select %p854, %s41, 1
        %s856 = smul.addr %s855, 4
        %s857 = smul.addr %s856, 4
        %s858 = scalar_lea.vmem %s16, %s857
        %p859 = pneg %p470
        %p860 = pneg %p467
        %p861 = scmp.lt.s32.totalorder %s41, 1
        %s862 = scalar_select %p861, %s41, 1
        %s863 = scalar_lea.vmem %s17, %s862
        %p864 = pneg %p496
        %p865 = pneg %p493
        %p866 = scmp.lt.s32.totalorder %s41, 1
        %s867 = scalar_select %p866, %s41, 1
        %s868 = smul.addr %s867, 8
        %s869 = smul.addr %s868, 4
        %s870 = scalar_lea.vmem %s18, %s869
        %p871 = pneg %p522
        %p872 = pneg %p519
        %p873 = scmp.lt.s32.totalorder %s41, 1
        %s874 = scalar_select %p873, %s41, 1
        %s875 = scalar_lea.vmem %s19, %s874
        %p876 = pneg %p548
        %p877 = pneg %p545
        %p878 = pneg %p569
        %p879 = pneg %p566
        %p880 = pneg %p590
        %p881 = pneg %p587
        %p882 = pneg %p616
        %p883 = pneg %p613
        %s884 = sand.u32 %s603, 1
        %s885 = scalar_lea.sflag [#allocation5], %s884
        %s886 = sand.u32 %s603, 1
        %s887 = smul.addr %s886, 4
        %s888 = scalar_lea.vmem [#allocation4], %s887
        %p889 = scmp.lt.s32.totalorder %s40, 1
        %s890 = scalar_select %p889, %s40, 1
        %s891 = smul.addr %s890, 2
        %s892 = smul.addr %s891, 4
        %s893 = scalar_lea.vmem %s0, %s892
        %p894 = scmp.lt.s32.totalorder %s41, 1
        %s895 = scalar_select %p894, %s41, 1
        %s896 = scalar_lea.vmem %s4, %s895
        %p897 = scmp.lt.s32.totalorder %s41, 1
        %s898 = scalar_select %p897, %s41, 1
        %s899 = scalar_lea.vmem %s5, %s898
        %p900 = scmp.lt.s32.totalorder %s41, 1
        %s901 = scalar_select %p900, %s41, 1
        %s902 = smul.addr %s901, 4
        %s903 = smul.addr %s902, 4
        %s904 = scalar_lea.vmem %s6, %s903
        %p905 = scmp.lt.s32.totalorder %s41, 1
        %s906 = scalar_select %p905, %s41, 1
        %s907 = scalar_lea.vmem %s7, %s906
        %p908 = scmp.lt.s32.totalorder %s41, 1
        %s909 = scalar_select %p908, %s41, 1
        %s910 = smul.addr %s909, 4
        %s911 = smul.addr %s910, 4
        %s912 = scalar_lea.vmem %s8, %s911
        %p913 = scmp.lt.s32.totalorder %s41, 1
        %s914 = scalar_select %p913, %s41, 1
        %s915 = scalar_lea.vmem %s9, %s914
        %p916 = scmp.lt.s32.totalorder %s41, 1
        %s917 = scalar_select %p916, %s41, 1
        %s918 = smul.addr %s917, 4
        %s919 = smul.addr %s918, 4
        %s920 = scalar_lea.vmem %s10, %s919
        %p921 = scmp.lt.s32.totalorder %s41, 1
        %s922 = scalar_select %p921, %s41, 1
        %s923 = scalar_lea.vmem %s11, %s922
        %p924 = scmp.lt.s32.totalorder %s41, 1
        %s925 = scalar_select %p924, %s41, 1
        %s926 = smul.addr %s925, 4
        %s927 = smul.addr %s926, 4
        %s928 = scalar_lea.vmem %s12, %s927
        %p929 = scmp.lt.s32.totalorder %s41, 1
        %s930 = scalar_select %p929, %s41, 1
        %s931 = scalar_lea.vmem %s13, %s930
        %p932 = scmp.lt.s32.totalorder %s41, 1
        %s933 = scalar_select %p932, %s41, 1
        %s934 = scalar_lea.vmem %s14, %s933
        %p935 = scmp.lt.s32.totalorder %s41, 1
        %s936 = scalar_select %p935, %s41, 1
        %s937 = scalar_lea.vmem %s15, %s936
        %p938 = scmp.lt.s32.totalorder %s41, 1
        %s939 = scalar_select %p938, %s41, 1
        %s940 = smul.addr %s939, 4
        %s941 = smul.addr %s940, 4
        %s942 = scalar_lea.vmem %s16, %s941
        %p943 = scmp.lt.s32.totalorder %s41, 1
        %s944 = scalar_select %p943, %s41, 1
        %s945 = scalar_lea.vmem %s17, %s944
        %p946 = scmp.lt.s32.totalorder %s41, 1
        %s947 = scalar_select %p946, %s41, 1
        %s948 = smul.addr %s947, 8
        %s949 = smul.addr %s948, 4
        %s950 = scalar_lea.vmem %s18, %s949
        %p951 = scmp.lt.s32.totalorder %s41, 1
        %s952 = scalar_select %p951, %s41, 1
        %s953 = scalar_lea.vmem %s19, %s952
        %p955 = scmp.eq.s32.totalorder %s41, 0
        // Predicated region
        $region109: #{siglip_vision_model.1} parent=107 // pred_check
          %p956 = pneg %p955
        $region110: #{siglip_vision_model.1} parent=107 // pred_check_branch
          %958 = sbr.rel (%p956) target = $region112
        $region111: #{siglip_vision_model.1} parent=107 // pred_region
          %v959 = vld [vmem:[%s893] sm:$0xff]
          %v961 = vcombine.high %v959, %v959
          %v963 = vpack.c.bf16 %v959, %v959
          %v964 = vpack.c.bf16 %v961, %v961
          %v965 = vld [vmem:[%s1] sm:$0xf]
          %v966 = vld [vmem:[%s1 + $0x4] sm:$0xf]
          %v967 = vld [vmem:[%s1 + $0x8] sm:$0xf]
          %v968 = vld [vmem:[%s1 + $0xc] sm:$0xf]
          %v969 = vld [vmem:[%s1 + $0x10] sm:$0xf]
          %v970 = vld [vmem:[%s1 + $0x14] sm:$0xf]
          %v971 = vld [vmem:[%s1 + $0x18] sm:$0xf]
          %v972 = vld [vmem:[%s1 + $0x1c] sm:$0xf]
          %v973 = vld [vmem:[%s1 + $0x20] sm:$0xf]
          %v974 = vld [vmem:[%s1 + $0x24] sm:$0xf]
          %v975 = vld [vmem:[%s1 + $0x28] sm:$0xf]
          %v976 = vld [vmem:[%s1 + $0x2c] sm:$0xf]
          %v977 = vld [vmem:[%s1 + $0x30] sm:$0xf]
          %v978 = vld [vmem:[%s1 + $0x34] sm:$0xf]
          %v979 = vld [vmem:[%s1 + $0x38] sm:$0xf]
          %v980 = vld [vmem:[%s1 + $0x3c] sm:$0xf]
          %v981 = vld [vmem:[%s1 + $0x40] sm:$0xf]
          %v982 = vld [vmem:[%s1 + $0x44] sm:$0xf]
          %v983 = vld [vmem:[%s1 + $0x48] sm:$0xf]
          %v984 = vld [vmem:[%s1 + $0x4c] sm:$0xf]
          %v985 = vld [vmem:[%s1 + $0x50] sm:$0xf]
          %v986 = vld [vmem:[%s1 + $0x54] sm:$0xf]
          %v987 = vld [vmem:[%s1 + $0x58] sm:$0xf]
          %v988 = vld [vmem:[%s1 + $0x5c] sm:$0xf]
          %v989 = vld [vmem:[%s2] sm:$0x1]
          %v991 = vlaneseq
          %v992 = vshrl.u32 %v991, 7
          %v993 = vsub.s32 0, %v992
          %v994 = vrot.slane %v989, %v993
          %v1020 = vunpack.c.l.b16 %v965
          %v1021 = vunpack.c.l.b16 %v966
          %v1022 = vunpack.c.l.b16 %v967
          %v1023 = vunpack.c.l.b16 %v968
          %v1024 = vunpack.c.l.b16 %v969
          %v1025 = vunpack.c.l.b16 %v970
          %v1026 = vunpack.c.l.b16 %v971
          %v1027 = vunpack.c.l.b16 %v972
          %v1028 = vunpack.c.l.b16 %v973
          %v1029 = vunpack.c.l.b16 %v974
          %v1030 = vunpack.c.l.b16 %v975
          %v1031 = vunpack.c.l.b16 %v976
          %v1032 = vunpack.c.l.b16 %v977
          %v1033 = vunpack.c.l.b16 %v978
          %v1034 = vunpack.c.l.b16 %v979
          %v1035 = vunpack.c.l.b16 %v980
          %v1036 = vunpack.c.l.b16 %v981
          %v1037 = vunpack.c.l.b16 %v982
          %v1038 = vunpack.c.l.b16 %v983
          %v1039 = vunpack.c.l.b16 %v984
          %v1040 = vunpack.c.l.b16 %v985
          %v1041 = vunpack.c.l.b16 %v986
          %v1042 = vunpack.c.l.b16 %v987
          %v1043 = vunpack.c.l.b16 %v988
          %v1044 = vpack.c.b16 %v1021, %v1020
          %v1045 = vpack.c.b16 %v1023, %v1022
          %v1046 = vpack.c.b16 %v1025, %v1024
          %v1047 = vpack.c.b16 %v1027, %v1026
          %v1048 = vpack.c.b16 %v1029, %v1028
          %v1049 = vpack.c.b16 %v1031, %v1030
          %v1050 = vpack.c.b16 %v1033, %v1032
          %v1051 = vpack.c.b16 %v1035, %v1034
          %v1052 = vpack.c.b16 %v1037, %v1036
          %v1053 = vpack.c.b16 %v1039, %v1038
          %v1054 = vpack.c.b16 %v1041, %v1040
          %v1055 = vpack.c.b16 %v1043, %v1042
          %vm1068 = vcmask 523264
          %v1070 = vsel %vm1068, %v964, 0
          %1072 = vmatprep.subr.bf16.mxu0 0
          %1073 = vmatpush1.bf16.msra.mxu0 %v1044
          %1074 = vmatprep.subr.bf16.mxu0 0
          %1075 = vmatpush1.bf16.msra.mxu0 %v1045
          %1076 = vmatprep.subr.bf16.mxu0 0
          %1077 = vmatpush1.bf16.msra.mxu0 %v1046
          %1078 = vmatprep.subr.bf16.mxu0 0
          %1079 = vmatpush1.bf16.msra.mxu0 %v1047
          %1080 = vmatprep.subr.bf16.mxu0 0
          %1081 = vmatpush1.bf16.msra.mxu0 %v1048
          %1082 = vmatprep.subr.bf16.mxu0 0
          %1083 = vmatpush1.bf16.msra.mxu0 %v1049
          %1084 = vmatprep.subr.bf16.mxu0 0
          %1085 = vmatpush1.bf16.msra.mxu0 %v1050
          %1086 = vmatprep.subr.bf16.mxu0 0
          %1087 = vmatpush1.bf16.msra.mxu0 %v1051
          %1088 = vmatprep.subr.bf16.mxu0 0
          %1089 = vmatpush1.bf16.msra.mxu0 %v1052
          %1090 = vmatprep.subr.bf16.mxu0 0
          %1091 = vmatpush1.bf16.msra.mxu0 %v1053
          %1092 = vmatprep.subr.bf16.mxu0 0
          %1093 = vmatpush1.bf16.msra.mxu0 %v1054
          %1094 = vmatprep.subr.bf16.mxu0 0
          %1095 = vmatpush1.bf16.msra.mxu0 %v1055
          %1096 = vmatprep.subr.bf16.mxu0 0
          %1097 = vmatpush1.bf16.msra.mxu0 0
          %1098 = vmatprep.subr.bf16.mxu0 0
          %1099 = vmatpush1.bf16.msra.mxu0 0
          %1100 = vmatprep.subr.bf16.mxu0 0
          %1101 = vmatpush1.bf16.msra.mxu0 0
          %1102 = vmatprep.subr.bf16.mxu0 0
          %1103 = vmatpush1.bf16.msra.mxu0 0
          %1104 = vmatprep.mubr.bf16.mxu0 %v1070
          %1105 = vmatmul.mubr.bf16.gmra.mrb[0].mxu0 %v963
          %v1106 = vpop.f32.mrb[0].mxu0
          %v1107 = vadd.f32 %v994, %v1106
          %v1108 = vpop.f32.mrb[0].mxu0
          %v1109 = vpop.f32.mrb[0].mxu0
          %v1110 = vpop.f32.mrb[0].mxu0
          %1111 = vdwg.mxu0
          %v1112 = vld [vmem:[%s3] sm:$0xf]
          %v1113 = vadd.f32 %v1107, %v1112
          %vm1114 = vcmask 257024
          %1115 = vst.msk [vmem:[#allocation2] sm:$0xf] %vm1114, %v1113
        $region112: #{siglip_vision_model.1} parent=107 // pred_fallthru
          _
        %v1116 = vld [vmem:[#allocation2] sm:$0xf]
        %v1117 = vld [vmem:[%s896] sm:$0x1]
        %v1118 = vld [vmem:[%s899] sm:$0x1]
        %vm1119 = vcmask 257024
        %v1120 = vsel %vm1119, %v1116, 0.0
        %1121 = vadd.xlane.f32.xlu0 %v1120
        %v1122 = vpop.xlane.xlu0 %1121
        %v1123 = vrcp.pop 32.0
        %v1124 = vmul.f32 %v1122, %v1123
        %v1125 = vsub.f32 %v1116, %v1124
        %v1126 = vmul.f32 %v1125, %v1125
        %v1127 = vsel %vm1119, %v1126, 0.0
        %1128 = vadd.xlane.f32.xlu0 %v1127
        %v1129 = vpop.xlane.xlu0 %1128
        %v1130 = vmul.f32 %v1129, %v1123
        %v1131 = vadd.f32 %v1130, 1e-06
        %v1132 = vrsqrt.pop %v1131
        %v1133 = vmul.f32 %v1125, %v1132
        %v1135 = vlaneseq
        %v1136 = vshrl.u32 %v1135, 7
        %v1137 = vsub.s32 0, %v1136
        %v1138 = vrot.slane %v1117, %v1137
        %v1140 = vmul.f32 %v1133, %v1138
        %v1142 = vlaneseq
        %v1143 = vshrl.u32 %v1142, 7
        %v1144 = vsub.s32 0, %v1143
        %v1145 = vrot.slane %v1118, %v1144
        %v1147 = vadd.f32 %v1140, %v1145
        %v1148 = vpack.c.bf16 %v1147, %v1147
        %v1149 = vld [vmem:[%s904] sm:$0xf]
        %v1150 = vld [vmem:[%s904 + $0x4] sm:$0xf]
        %v1151 = vld [vmem:[%s904 + $0x8] sm:$0xf]
        %v1152 = vld [vmem:[%s904 + $0xc] sm:$0xf]
        %v1153 = vld [vmem:[%s907] sm:$0x1]
        %v1155 = vlaneseq
        %v1156 = vshrl.u32 %v1155, 7
        %v1157 = vsub.s32 0, %v1156
        %v1158 = vrot.slane %v1153, %v1157
        %v1164 = vunpack.c.l.b16 %v1149
        %v1165 = vunpack.c.l.b16 %v1150
        %v1166 = vunpack.c.l.b16 %v1151
        %v1167 = vunpack.c.l.b16 %v1152
        %v1168 = vpack.c.b16 %v1165, %v1164
        %v1169 = vpack.c.b16 %v1167, %v1166
        %vm1172 = vcmask 261120
        %v1174 = vsel %vm1172, %v1148, 0
        %1176 = vmatprep.subr.bf16.mxu0 0
        %1177 = vmatpush1.bf16.msra.mxu0 %v1168
        %1178 = vmatprep.subr.bf16.mxu0 0
        %1179 = vmatpush1.bf16.msra.mxu0 %v1169
        %1180 = vmatprep.subr.bf16.mxu0 0
        %1181 = vmatpush1.bf16.msra.mxu0 0
        %1182 = vmatprep.subr.bf16.mxu0 0
        %1183 = vmatpush1.bf16.msra.mxu0 0
        %1184 = vmatprep.subr.bf16.mxu0 0
        %1185 = vmatpush1.bf16.msra.mxu0 0
        %1186 = vmatprep.subr.bf16.mxu0 0
        %1187 = vmatpush1.bf16.msra.mxu0 0
        %1188 = vmatprep.subr.bf16.mxu0 0
        %1189 = vmatpush1.bf16.msra.mxu0 0
        %1190 = vmatprep.subr.bf16.mxu0 0
        %1191 = vmatpush1.bf16.msra.mxu0 0
        %1192 = vmatprep.subr.bf16.mxu0 0
        %1193 = vmatpush1.bf16.msra.mxu0 0
        %1194 = vmatprep.subr.bf16.mxu0 0
        %1195 = vmatpush1.bf16.msra.mxu0 0
        %1196 = vmatprep.subr.bf16.mxu0 0
        %1197 = vmatpush1.bf16.msra.mxu0 0
        %1198 = vmatprep.subr.bf16.mxu0 0
        %1199 = vmatpush1.bf16.msra.mxu0 0
        %1200 = vmatprep.subr.bf16.mxu0 0
        %1201 = vmatpush1.bf16.msra.mxu0 0
        %1202 = vmatprep.subr.bf16.mxu0 0
        %1203 = vmatpush1.bf16.msra.mxu0 0
        %1204 = vmatprep.subr.bf16.mxu0 0
        %1205 = vmatpush1.bf16.msra.mxu0 0
        %1206 = vmatprep.subr.bf16.mxu0 0
        %1207 = vmatpush1.bf16.msra.mxu0 0
        %1208 = vmatprep.mubr.bf16.mxu0 0
        %1209 = vmatmul.mubr.bf16.gmra.mrb[0].mxu0 %v1174
        %v1210 = vpop.f32.mrb[0].mxu0
        %v1211 = vadd.f32 %v1158, %v1210
        %v1212 = vpop.f32.mrb[0].mxu0
        %v1213 = vpop.f32.mrb[0].mxu0
        %v1214 = vpop.f32.mrb[0].mxu0
        %1215 = vdwg.mxu0
        %v1216 = vld [vmem:[%s912] sm:$0xf]
        %v1217 = vld [vmem:[%s912 + $0x4] sm:$0xf]
        %v1218 = vld [vmem:[%s912 + $0x8] sm:$0xf]
        %v1219 = vld [vmem:[%s912 + $0xc] sm:$0xf]
        %v1220 = vld [vmem:[%s915] sm:$0x1]
        %v1222 = vlaneseq
        %v1223 = vshrl.u32 %v1222, 7
        %v1224 = vsub.s32 0, %v1223
        %v1225 = vrot.slane %v1220, %v1224
        %v1231 = vunpack.c.l.b16 %v1216
        %v1232 = vunpack.c.l.b16 %v1217
        %v1233 = vunpack.c.l.b16 %v1218
        %v1234 = vunpack.c.l.b16 %v1219
        %v1235 = vpack.c.b16 %v1232, %v1231
        %v1236 = vpack.c.b16 %v1234, %v1233
        %1239 = vmatprep.subr.bf16.mxu0 0
        %1240 = vmatpush1.bf16.msra.mxu0 %v1235
        %1241 = vmatprep.subr.bf16.mxu0 0
        %1242 = vmatpush1.bf16.msra.mxu0 %v1236
        %1243 = vmatprep.subr.bf16.mxu0 0
        %1244 = vmatpush1.bf16.msra.mxu0 0
        %1245 = vmatprep.subr.bf16.mxu0 0
        %1246 = vmatpush1.bf16.msra.mxu0 0
        %1247 = vmatprep.subr.bf16.mxu0 0
        %1248 = vmatpush1.bf16.msra.mxu0 0
        %1249 = vmatprep.subr.bf16.mxu0 0
        %1250 = vmatpush1.bf16.msra.mxu0 0
        %1251 = vmatprep.subr.bf16.mxu0 0
        %1252 = vmatpush1.bf16.msra.mxu0 0
        %1253 = vmatprep.subr.bf16.mxu0 0
        %1254 = vmatpush1.bf16.msra.mxu0 0
        %1255 = vmatprep.subr.bf16.mxu0 0
        %1256 = vmatpush1.bf16.msra.mxu0 0
        %1257 = vmatprep.subr.bf16.mxu0 0
        %1258 = vmatpush1.bf16.msra.mxu0 0
        %1259 = vmatprep.subr.bf16.mxu0 0
        %1260 = vmatpush1.bf16.msra.mxu0 0
        %1261 = vmatprep.subr.bf16.mxu0 0
        %1262 = vmatpush1.bf16.msra.mxu0 0
        %1263 = vmatprep.subr.bf16.mxu0 0
        %1264 = vmatpush1.bf16.msra.mxu0 0
        %1265 = vmatprep.subr.bf16.mxu0 0
        %1266 = vmatpush1.bf16.msra.mxu0 0
        %1267 = vmatprep.subr.bf16.mxu0 0
        %1268 = vmatpush1.bf16.msra.mxu0 0
        %1269 = vmatprep.subr.bf16.mxu0 0
        %1270 = vmatpush1.bf16.msra.mxu0 0
        %1271 = vmatprep.mubr.bf16.mxu0 0
        %1272 = vmatmul.mubr.bf16.gmra.mrb[0].mxu0 %v1174
        %v1273 = vpop.f32.mrb[0].mxu0
        %v1274 = vadd.f32 %v1225, %v1273
        %v1275 = vpop.f32.mrb[0].mxu0
        %v1276 = vpop.f32.mrb[0].mxu0
        %v1277 = vpop.f32.mrb[0].mxu0
        %1278 = vdwg.mxu0
        %v1279 = vld [vmem:[%s920] sm:$0xf]
        %v1280 = vld [vmem:[%s920 + $0x4] sm:$0xf]
        %v1281 = vld [vmem:[%s920 + $0x8] sm:$0xf]
        %v1282 = vld [vmem:[%s920 + $0xc] sm:$0xf]
        %v1283 = vld [vmem:[%s923] sm:$0x1]
        %v1285 = vlaneseq
        %v1286 = vshrl.u32 %v1285, 7
        %v1287 = vsub.s32 0, %v1286
        %v1288 = vrot.slane %v1283, %v1287
        %v1294 = vunpack.c.l.b16 %v1279
        %v1295 = vunpack.c.l.b16 %v1280
        %v1296 = vunpack.c.l.b16 %v1281
        %v1297 = vunpack.c.l.b16 %v1282
        %v1298 = vpack.c.b16 %v1295, %v1294
        %v1299 = vpack.c.b16 %v1297, %v1296
        %1302 = vmatprep.subr.bf16.mxu0 0
        %1303 = vmatpush1.bf16.msra.mxu0 %v1298
        %1304 = vmatprep.subr.bf16.mxu0 0
        %1305 = vmatpush1.bf16.msra.mxu0 %v1299
        %1306 = vmatprep.subr.bf16.mxu0 0
        %1307 = vmatpush1.bf16.msra.mxu0 0
        %1308 = vmatprep.subr.bf16.mxu0 0
        %1309 = vmatpush1.bf16.msra.mxu0 0
        %1310 = vmatprep.subr.bf16.mxu0 0
        %1311 = vmatpush1.bf16.msra.mxu0 0
        %1312 = vmatprep.subr.bf16.mxu0 0
        %1313 = vmatpush1.bf16.msra.mxu0 0
        %1314 = vmatprep.subr.bf16.mxu0 0
        %1315 = vmatpush1.bf16.msra.mxu0 0
        %1316 = vmatprep.subr.bf16.mxu0 0
        %1317 = vmatpush1.bf16.msra.mxu0 0
        %1318 = vmatprep.subr.bf16.mxu0 0
        %1319 = vmatpush1.bf16.msra.mxu0 0
        %1320 = vmatprep.subr.bf16.mxu0 0
        %1321 = vmatpush1.bf16.msra.mxu0 0
        %1322 = vmatprep.subr.bf16.mxu0 0
        %1323 = vmatpush1.bf16.msra.mxu0 0
        %1324 = vmatprep.subr.bf16.mxu0 0
        %1325 = vmatpush1.bf16.msra.mxu0 0
        %1326 = vmatprep.subr.bf16.mxu0 0
        %1327 = vmatpush1.bf16.msra.mxu0 0
        %1328 = vmatprep.subr.bf16.mxu0 0
        %1329 = vmatpush1.bf16.msra.mxu0 0
        %1330 = vmatprep.subr.bf16.mxu0 0
        %1331 = vmatpush1.bf16.msra.mxu0 0
        %1332 = vmatprep.subr.bf16.mxu0 0
        %1333 = vmatpush1.bf16.msra.mxu0 0
        %1334 = vmatprep.mubr.bf16.mxu0 0
        %1335 = vmatmul.mubr.bf16.gmra.mrb[0].mxu0 %v1174
        %v1336 = vpop.f32.mrb[0].mxu0
        %v1337 = vadd.f32 %v1288, %v1336
        %v1338 = vpop.f32.mrb[0].mxu0
        %v1339 = vpop.f32.mrb[0].mxu0
        %v1340 = vpop.f32.mrb[0].mxu0
        %1341 = vdwg.mxu0
        %v1342 = vpack.c.bf16 %v1211, %v1211
        %v1343 = vpack.c.bf16 %v1274, %v1274
        %vm1344 = vcmask 64512
        %v1346 = vsel %vm1344, %v1342, 0
        %v1349 = vsel %vm1344, %v1343, 0
        %1351 = vmatprep.subr.bf16.mxu0 0
        %1352 = vmatpush1.bf16.xpose.msra.mxu0 %v1349
        %1353 = vmatprep.subr.bf16.mxu0 0
        %1354 = vmatpush1.bf16.xpose.msra.mxu0 0
        %1355 = vmatprep.subr.bf16.mxu0 0
        %1356 = vmatpush1.bf16.xpose.msra.mxu0 0
        %1357 = vmatprep.subr.bf16.mxu0 0
        %1358 = vmatpush1.bf16.xpose.msra.mxu0 0
        %1359 = vmatprep.subr.bf16.mxu0 0
        %1360 = vmatpush1.bf16.xpose.msra.mxu0 0
        %1361 = vmatprep.subr.bf16.mxu0 0
        %1362 = vmatpush1.bf16.xpose.msra.mxu0 0
        %1363 = vmatprep.subr.bf16.mxu0 0
        %1364 = vmatpush1.bf16.xpose.msra.mxu0 0
        %1365 = vmatprep.subr.bf16.mxu0 0
        %1366 = vmatpush1.bf16.xpose.msra.mxu0 0
        %1367 = vmatprep.subr.bf16.mxu0 0
        %1368 = vmatpush1.bf16.xpose.msra.mxu0 0
        %1369 = vmatprep.subr.bf16.mxu0 0
        %1370 = vmatpush1.bf16.xpose.msra.mxu0 0
        %1371 = vmatprep.subr.bf16.mxu0 0
        %1372 = vmatpush1.bf16.xpose.msra.mxu0 0
        %1373 = vmatprep.subr.bf16.mxu0 0
        %1374 = vmatpush1.bf16.xpose.msra.mxu0 0
        %1375 = vmatprep.subr.bf16.mxu0 0
        %1376 = vmatpush1.bf16.xpose.msra.mxu0 0
        %1377 = vmatprep.subr.bf16.mxu0 0
        %1378 = vmatpush1.bf16.xpose.msra.mxu0 0
        %1379 = vmatprep.subr.bf16.mxu0 0
        %1380 = vmatpush1.bf16.xpose.msra.mxu0 0
        %1381 = vmatprep.subr.bf16.mxu0 0
        %1382 = vmatpush1.bf16.xpose.msra.mxu0 0
        %1383 = vmatprep.mubr.bf16.mxu0 0
        %1384 = vmatmul.mubr.bf16.gmra.mrb[0].mxu0 %v1346
        %v1385 = vpop.f32.mrb[0].mxu0
        %v1386 = vadd.f32 0.0, %v1385
        %v1387 = vpop.f32.mrb[0].mxu0
        %v1388 = vpop.f32.mrb[0].mxu0
        %v1389 = vpop.f32.mrb[0].mxu0
        %1390 = vdwg.mxu0
        %v1391 = vmul.f32 %v1386, 0.35355338
        %vm1392 = vcmask 27648
        %v1393 = vsel %vm1392, %v1391, -inf
        %1394 = vmax.xlane.f32.xlu0 %v1393
        %v1395 = vpop.xlane.xlu0 %1394
        %v1396 = vsub.f32 %v1391, %v1395
        %v1397 = vmul.f32 %v1396, 1.442695
        %v1398 = vpow.pop %v1397
        %v1399 = vsel %vm1392, %v1398, 0.0
        %1400 = vadd.xlane.f32.xlu0 %v1399
        %v1401 = vpop.xlane.xlu0 %1400
        %v1402 = vrcp.pop %v1401
        %v1403 = vmul.f32 %v1398, %v1402
        %v1404 = vpack.c.bf16 %v1403, %v1403
        %v1405 = vpack.c.bf16 %v1337, %v1337
        %vm1406 = vcmask 31744
        %v1408 = vsel %vm1406, %v1404, 0
        %vm1410 = vcmask 1041408
        %v1412 = vsel %vm1410, %v1405, 0
        %1414 = vmatprep.subr.bf16.mxu0 0
        %1415 = vmatpush1.bf16.msra.mxu0 %v1412
        %1416 = vmatprep.subr.bf16.mxu0 0
        %1417 = vmatpush1.bf16.msra.mxu0 0
        %1418 = vmatprep.subr.bf16.mxu0 0
        %1419 = vmatpush1.bf16.msra.mxu0 0
        %1420 = vmatprep.subr.bf16.mxu0 0
        %1421 = vmatpush1.bf16.msra.mxu0 0
        %1422 = vmatprep.subr.bf16.mxu0 0
        %1423 = vmatpush1.bf16.msra.mxu0 0
        %1424 = vmatprep.subr.bf16.mxu0 0
        %1425 = vmatpush1.bf16.msra.mxu0 0
        %1426 = vmatprep.subr.bf16.mxu0 0
        %1427 = vmatpush1.bf16.msra.mxu0 0
        %1428 = vmatprep.subr.bf16.mxu0 0
        %1429 = vmatpush1.bf16.msra.mxu0 0
        %1430 = vmatprep.subr.bf16.mxu0 0
        %1431 = vmatpush1.bf16.msra.mxu0 0
        %1432 = vmatprep.subr.bf16.mxu0 0
        %1433 = vmatpush1.bf16.msra.mxu0 0
        %1434 = vmatprep.subr.bf16.mxu0 0
        %1435 = vmatpush1.bf16.msra.mxu0 0
        %1436 = vmatprep.subr.bf16.mxu0 0
        %1437 = vmatpush1.bf16.msra.mxu0 0
        %1438 = vmatprep.subr.bf16.mxu0 0
        %1439 = vmatpush1.bf16.msra.mxu0 0
        %1440 = vmatprep.subr.bf16.mxu0 0
        %1441 = vmatpush1.bf16.msra.mxu0 0
        %1442 = vmatprep.subr.bf16.mxu0 0
        %1443 = vmatpush1.bf16.msra.mxu0 0
        %1444 = vmatprep.subr.bf16.mxu0 0
        %1445 = vmatpush1.bf16.msra.mxu0 0
        %1446 = vmatprep.mubr.bf16.mxu0 0
        %1447 = vmatmul.mubr.bf16.gmra.mrb[0].mxu0 %v1408
        %v1448 = vpop.f32.mrb[0].mxu0
        %v1449 = vadd.f32 0.0, %v1448
        %v1450 = vpop.f32.mrb[0].mxu0
        %v1451 = vpop.f32.mrb[0].mxu0
        %v1452 = vpop.f32.mrb[0].mxu0
        %1453 = vdwg.mxu0
        %vm1454 = vcmask 60416
        %1455 = vst.msk [vmem:[#allocation3] sm:$0xf] %vm1454, %v1449
        %1457 = vrot.lane.b32.xlu0 %v1342, 120
        %v1458 = vpop.permute.xlu0 %1457
        %1460 = vrot.lane.b32.xlu0 %v1343, 120
        %v1461 = vpop.permute.xlu0 %1460
        %v1463 = vsel %vm1344, %v1458, 0
        %v1466 = vsel %vm1344, %v1461, 0
        %1468 = vmatprep.subr.bf16.mxu0 0
        %1469 = vmatpush1.bf16.xpose.msra.mxu0 %v1466
        %1470 = vmatprep.subr.bf16.mxu0 0
        %1471 = vmatpush1.bf16.xpose.msra.mxu0 0
        %1472 = vmatprep.subr.bf16.mxu0 0
        %1473 = vmatpush1.bf16.xpose.msra.mxu0 0
        %1474 = vmatprep.subr.bf16.mxu0 0
        %1475 = vmatpush1.bf16.xpose.msra.mxu0 0
        %1476 = vmatprep.subr.bf16.mxu0 0
        %1477 = vmatpush1.bf16.xpose.msra.mxu0 0
        %1478 = vmatprep.subr.bf16.mxu0 0
        %1479 = vmatpush1.bf16.xpose.msra.mxu0 0
        %1480 = vmatprep.subr.bf16.mxu0 0
        %1481 = vmatpush1.bf16.xpose.msra.mxu0 0
        %1482 = vmatprep.subr.bf16.mxu0 0
        %1483 = vmatpush1.bf16.xpose.msra.mxu0 0
        %1484 = vmatprep.subr.bf16.mxu0 0
        %1485 = vmatpush1.bf16.xpose.msra.mxu0 0
        %1486 = vmatprep.subr.bf16.mxu0 0
        %1487 = vmatpush1.bf16.xpose.msra.mxu0 0
        %1488 = vmatprep.subr.bf16.mxu0 0
        %1489 = vmatpush1.bf16.xpose.msra.mxu0 0
        %1490 = vmatprep.subr.bf16.mxu0 0
        %1491 = vmatpush1.bf16.xpose.msra.mxu0 0
        %1492 = vmatprep.subr.bf16.mxu0 0
        %1493 = vmatpush1.bf16.xpose.msra.mxu0 0
        %1494 = vmatprep.subr.bf16.mxu0 0
        %1495 = vmatpush1.bf16.xpose.msra.mxu0 0
        %1496 = vmatprep.subr.bf16.mxu0 0
        %1497 = vmatpush1.bf16.xpose.msra.mxu0 0
        %1498 = vmatprep.subr.bf16.mxu0 0
        %1499 = vmatpush1.bf16.xpose.msra.mxu0 0
        %1500 = vmatprep.mubr.bf16.mxu0 0
        %1501 = vmatmul.mubr.bf16.gmra.mrb[0].mxu0 %v1463
        %v1502 = vpop.f32.mrb[0].mxu0
        %v1503 = vadd.f32 0.0, %v1502
        %v1504 = vpop.f32.mrb[0].mxu0
        %v1505 = vpop.f32.mrb[0].mxu0
        %v1506 = vpop.f32.mrb[0].mxu0
        %1507 = vdwg.mxu0
        %v1508 = vmul.f32 %v1503, 0.35355338
        %v1509 = vsel %vm1392, %v1508, -inf
        %1510 = vmax.xlane.f32.xlu0 %v1509
        %v1511 = vpop.xlane.xlu0 %1510
        %v1512 = vsub.f32 %v1508, %v1511
        %v1513 = vmul.f32 %v1512, 1.442695
        %v1514 = vpow.pop %v1513
        %v1515 = vsel %vm1392, %v1514, 0.0
        %1516 = vadd.xlane.f32.xlu0 %v1515
        %v1517 = vpop.xlane.xlu0 %1516
        %v1518 = vrcp.pop %v1517
        %v1519 = vmul.f32 %v1514, %v1518
        %v1520 = vpack.c.bf16 %v1519, %v1519
        %1522 = vrot.lane.b32.xlu0 %v1405, 120
        %v1523 = vpop.permute.xlu0 %1522
        %v1525 = vsel %vm1406, %v1520, 0
        %v1528 = vsel %vm1410, %v1523, 0
        %1530 = vmatprep.subr.bf16.mxu0 0
        %1531 = vmatpush1.bf16.msra.mxu0 %v1528
        %1532 = vmatprep.subr.bf16.mxu0 0
        %1533 = vmatpush1.bf16.msra.mxu0 0
        %1534 = vmatprep.subr.bf16.mxu0 0
        %1535 = vmatpush1.bf16.msra.mxu0 0
        %1536 = vmatprep.subr.bf16.mxu0 0
        %1537 = vmatpush1.bf16.msra.mxu0 0
        %1538 = vmatprep.subr.bf16.mxu0 0
        %1539 = vmatpush1.bf16.msra.mxu0 0
        %1540 = vmatprep.subr.bf16.mxu0 0
        %1541 = vmatpush1.bf16.msra.mxu0 0
        %1542 = vmatprep.subr.bf16.mxu0 0
        %1543 = vmatpush1.bf16.msra.mxu0 0
        %1544 = vmatprep.subr.bf16.mxu0 0
        %1545 = vmatpush1.bf16.msra.mxu0 0
        %1546 = vmatprep.subr.bf16.mxu0 0
        %1547 = vmatpush1.bf16.msra.mxu0 0
        %1548 = vmatprep.subr.bf16.mxu0 0
        %1549 = vmatpush1.bf16.msra.mxu0 0
        %1550 = vmatprep.subr.bf16.mxu0 0
        %1551 = vmatpush1.bf16.msra.mxu0 0
        %1552 = vmatprep.subr.bf16.mxu0 0
        %1553 = vmatpush1.bf16.msra.mxu0 0
        %1554 = vmatprep.subr.bf16.mxu0 0
        %1555 = vmatpush1.bf16.msra.mxu0 0
        %1556 = vmatprep.subr.bf16.mxu0 0
        %1557 = vmatpush1.bf16.msra.mxu0 0
        %1558 = vmatprep.subr.bf16.mxu0 0
        %1559 = vmatpush1.bf16.msra.mxu0 0
        %1560 = vmatprep.subr.bf16.mxu0 0
        %1561 = vmatpush1.bf16.msra.mxu0 0
        %1562 = vmatprep.mubr.bf16.mxu0 0
        %1563 = vmatmul.mubr.bf16.gmra.mrb[0].mxu0 %v1525
        %v1564 = vpop.f32.mrb[0].mxu0
        %v1565 = vadd.f32 0.0, %v1564
        %v1566 = vpop.f32.mrb[0].mxu0
        %v1567 = vpop.f32.mrb[0].mxu0
        %v1568 = vpop.f32.mrb[0].mxu0
        %1569 = vdwg.mxu0
        %1571 = vrot.lane.b32.xlu0 %v1565, 8
        %v1572 = vpop.permute.xlu0 %1571
        %vm1574 = vcmask 126016
        %1575 = vst.msk [vmem:[#allocation3] sm:$0xf] %vm1574, %v1572
        %1576 = vrot.lane.b32.xlu0 %v1342, 112
        %v1577 = vpop.permute.xlu0 %1576
        %1578 = vrot.lane.b32.xlu0 %v1343, 112
        %v1579 = vpop.permute.xlu0 %1578
        %v1581 = vsel %vm1344, %v1577, 0
        %v1584 = vsel %vm1344, %v1579, 0
        %1586 = vmatprep.subr.bf16.mxu0 0
        %1587 = vmatpush1.bf16.xpose.msra.mxu0 %v1584
        %1588 = vmatprep.subr.bf16.mxu0 0
        %1589 = vmatpush1.bf16.xpose.msra.mxu0 0
        %1590 = vmatprep.subr.bf16.mxu0 0
        %1591 = vmatpush1.bf16.xpose.msra.mxu0 0
        %1592 = vmatprep.subr.bf16.mxu0 0
        %1593 = vmatpush1.bf16.xpose.msra.mxu0 0
        %1594 = vmatprep.subr.bf16.mxu0 0
        %1595 = vmatpush1.bf16.xpose.msra.mxu0 0
        %1596 = vmatprep.subr.bf16.mxu0 0
        %1597 = vmatpush1.bf16.xpose.msra.mxu0 0
        %1598 = vmatprep.subr.bf16.mxu0 0
        %1599 = vmatpush1.bf16.xpose.msra.mxu0 0
        %1600 = vmatprep.subr.bf16.mxu0 0
        %1601 = vmatpush1.bf16.xpose.msra.mxu0 0
        %1602 = vmatprep.subr.bf16.mxu0 0
        %1603 = vmatpush1.bf16.xpose.msra.mxu0 0
        %1604 = vmatprep.subr.bf16.mxu0 0
        %1605 = vmatpush1.bf16.xpose.msra.mxu0 0
        %1606 = vmatprep.subr.bf16.mxu0 0
        %1607 = vmatpush1.bf16.xpose.msra.mxu0 0
        %1608 = vmatprep.subr.bf16.mxu0 0
        %1609 = vmatpush1.bf16.xpose.msra.mxu0 0
        %1610 = vmatprep.subr.bf16.mxu0 0
        %1611 = vmatpush1.bf16.xpose.msra.mxu0 0
        %1612 = vmatprep.subr.bf16.mxu0 0
        %1613 = vmatpush1.bf16.xpose.msra.mxu0 0
        %1614 = vmatprep.subr.bf16.mxu0 0
        %1615 = vmatpush1.bf16.xpose.msra.mxu0 0
        %1616 = vmatprep.subr.bf16.mxu0 0
        %1617 = vmatpush1.bf16.xpose.msra.mxu0 0
        %1618 = vmatprep.mubr.bf16.mxu0 0
        %1619 = vmatmul.mubr.bf16.gmra.mrb[0].mxu0 %v1581
        %v1620 = vpop.f32.mrb[0].mxu0
        %v1621 = vadd.f32 0.0, %v1620
        %v1622 = vpop.f32.mrb[0].mxu0
        %v1623 = vpop.f32.mrb[0].mxu0
        %v1624 = vpop.f32.mrb[0].mxu0
        %1625 = vdwg.mxu0
        %v1626 = vmul.f32 %v1621, 0.35355338
        %v1627 = vsel %vm1392, %v1626, -inf
        %1628 = vmax.xlane.f32.xlu0 %v1627
        %v1629 = vpop.xlane.xlu0 %1628
        %v1630 = vsub.f32 %v1626, %v1629
        %v1631 = vmul.f32 %v1630, 1.442695
        %v1632 = vpow.pop %v1631
        %v1633 = vsel %vm1392, %v1632, 0.0
        %1634 = vadd.xlane.f32.xlu0 %v1633
        %v1635 = vpop.xlane.xlu0 %1634
        %v1636 = vrcp.pop %v1635
        %v1637 = vmul.f32 %v1632, %v1636
        %v1638 = vpack.c.bf16 %v1637, %v1637
        %1639 = vrot.lane.b32.xlu0 %v1405, 112
        %v1640 = vpop.permute.xlu0 %1639
        %v1642 = vsel %vm1406, %v1638, 0
        %v1645 = vsel %vm1410, %v1640, 0
        %1647 = vmatprep.subr.bf16.mxu0 0
        %1648 = vmatpush1.bf16.msra.mxu0 %v1645
        %1649 = vmatprep.subr.bf16.mxu0 0
        %1650 = vmatpush1.bf16.msra.mxu0 0
        %1651 = vmatprep.subr.bf16.mxu0 0
        %1652 = vmatpush1.bf16.msra.mxu0 0
        %1653 = vmatprep.subr.bf16.mxu0 0
        %1654 = vmatpush1.bf16.msra.mxu0 0
        %1655 = vmatprep.subr.bf16.mxu0 0
        %1656 = vmatpush1.bf16.msra.mxu0 0
        %1657 = vmatprep.subr.bf16.mxu0 0
        %1658 = vmatpush1.bf16.msra.mxu0 0
        %1659 = vmatprep.subr.bf16.mxu0 0
        %1660 = vmatpush1.bf16.msra.mxu0 0
        %1661 = vmatprep.subr.bf16.mxu0 0
        %1662 = vmatpush1.bf16.msra.mxu0 0
        %1663 = vmatprep.subr.bf16.mxu0 0
        %1664 = vmatpush1.bf16.msra.mxu0 0
        %1665 = vmatprep.subr.bf16.mxu0 0
        %1666 = vmatpush1.bf16.msra.mxu0 0
        %1667 = vmatprep.subr.bf16.mxu0 0
        %1668 = vmatpush1.bf16.msra.mxu0 0
        %1669 = vmatprep.subr.bf16.mxu0 0
        %1670 = vmatpush1.bf16.msra.mxu0 0
        %1671 = vmatprep.subr.bf16.mxu0 0
        %1672 = vmatpush1.bf16.msra.mxu0 0
        %1673 = vmatprep.subr.bf16.mxu0 0
        %1674 = vmatpush1.bf16.msra.mxu0 0
        %1675 = vmatprep.subr.bf16.mxu0 0
        %1676 = vmatpush1.bf16.msra.mxu0 0
        %1677 = vmatprep.subr.bf16.mxu0 0
        %1678 = vmatpush1.bf16.msra.mxu0 0
        %1679 = vmatprep.mubr.bf16.mxu0 0
        %1680 = vmatmul.mubr.bf16.gmra.mrb[0].mxu0 %v1642
        %v1681 = vpop.f32.mrb[0].mxu0
        %v1682 = vadd.f32 0.0, %v1681
        %v1683 = vpop.f32.mrb[0].mxu0
        %v1684 = vpop.f32.mrb[0].mxu0
        %v1685 = vpop.f32.mrb[0].mxu0
        %1686 = vdwg.mxu0
        %1688 = vrot.lane.b32.xlu0 %v1682, 16
        %v1689 = vpop.permute.xlu0 %1688
        %vm1691 = vcmask 191616
        %1692 = vst.msk [vmem:[#allocation3] sm:$0xf] %vm1691, %v1689
        %1693 = vrot.lane.b32.xlu0 %v1342, 104
        %v1694 = vpop.permute.xlu0 %1693
        %1695 = vrot.lane.b32.xlu0 %v1343, 104
        %v1696 = vpop.permute.xlu0 %1695
        %v1698 = vsel %vm1344, %v1694, 0
        %v1701 = vsel %vm1344, %v1696, 0
        %1703 = vmatprep.subr.bf16.mxu0 0
        %1704 = vmatpush1.bf16.xpose.msra.mxu0 %v1701
        %1705 = vmatprep.subr.bf16.mxu0 0
        %1706 = vmatpush1.bf16.xpose.msra.mxu0 0
        %1707 = vmatprep.subr.bf16.mxu0 0
        %1708 = vmatpush1.bf16.xpose.msra.mxu0 0
        %1709 = vmatprep.subr.bf16.mxu0 0
        %1710 = vmatpush1.bf16.xpose.msra.mxu0 0
        %1711 = vmatprep.subr.bf16.mxu0 0
        %1712 = vmatpush1.bf16.xpose.msra.mxu0 0
        %1713 = vmatprep.subr.bf16.mxu0 0
        %1714 = vmatpush1.bf16.xpose.msra.mxu0 0
        %1715 = vmatprep.subr.bf16.mxu0 0
        %1716 = vmatpush1.bf16.xpose.msra.mxu0 0
        %1717 = vmatprep.subr.bf16.mxu0 0
        %1718 = vmatpush1.bf16.xpose.msra.mxu0 0
        %1719 = vmatprep.subr.bf16.mxu0 0
        %1720 = vmatpush1.bf16.xpose.msra.mxu0 0
        %1721 = vmatprep.subr.bf16.mxu0 0
        %1722 = vmatpush1.bf16.xpose.msra.mxu0 0
        %1723 = vmatprep.subr.bf16.mxu0 0
        %1724 = vmatpush1.bf16.xpose.msra.mxu0 0
        %1725 = vmatprep.subr.bf16.mxu0 0
        %1726 = vmatpush1.bf16.xpose.msra.mxu0 0
        %1727 = vmatprep.subr.bf16.mxu0 0
        %1728 = vmatpush1.bf16.xpose.msra.mxu0 0
        %1729 = vmatprep.subr.bf16.mxu0 0
        %1730 = vmatpush1.bf16.xpose.msra.mxu0 0
        %1731 = vmatprep.subr.bf16.mxu0 0
        %1732 = vmatpush1.bf16.xpose.msra.mxu0 0
        %1733 = vmatprep.subr.bf16.mxu0 0
        %1734 = vmatpush1.bf16.xpose.msra.mxu0 0
        %1735 = vmatprep.mubr.bf16.mxu0 0
        %1736 = vmatmul.mubr.bf16.gmra.mrb[0].mxu0 %v1698
        %v1737 = vpop.f32.mrb[0].mxu0
        %v1738 = vadd.f32 0.0, %v1737
        %v1739 = vpop.f32.mrb[0].mxu0
        %v1740 = vpop.f32.mrb[0].mxu0
        %v1741 = vpop.f32.mrb[0].mxu0
        %1742 = vdwg.mxu0
        %v1743 = vmul.f32 %v1738, 0.35355338
        %v1744 = vsel %vm1392, %v1743, -inf
        %1745 = vmax.xlane.f32.xlu0 %v1744
        %v1746 = vpop.xlane.xlu0 %1745
        %v1747 = vsub.f32 %v1743, %v1746
        %v1748 = vmul.f32 %v1747, 1.442695
        %v1749 = vpow.pop %v1748
        %v1750 = vsel %vm1392, %v1749, 0.0
        %1751 = vadd.xlane.f32.xlu0 %v1750
        %v1752 = vpop.xlane.xlu0 %1751
        %v1753 = vrcp.pop %v1752
        %v1754 = vmul.f32 %v1749, %v1753
        %v1755 = vpack.c.bf16 %v1754, %v1754
        %1756 = vrot.lane.b32.xlu0 %v1405, 104
        %v1757 = vpop.permute.xlu0 %1756
        %v1759 = vsel %vm1406, %v1755, 0
        %v1762 = vsel %vm1410, %v1757, 0
        %1764 = vmatprep.subr.bf16.mxu0 0
        %1765 = vmatpush1.bf16.msra.mxu0 %v1762
        %1766 = vmatprep.subr.bf16.mxu0 0
        %1767 = vmatpush1.bf16.msra.mxu0 0
        %1768 = vmatprep.subr.bf16.mxu0 0
        %1769 = vmatpush1.bf16.msra.mxu0 0
        %1770 = vmatprep.subr.bf16.mxu0 0
        %1771 = vmatpush1.bf16.msra.mxu0 0
        %1772 = vmatprep.subr.bf16.mxu0 0
        %1773 = vmatpush1.bf16.msra.mxu0 0
        %1774 = vmatprep.subr.bf16.mxu0 0
        %1775 = vmatpush1.bf16.msra.mxu0 0
        %1776 = vmatprep.subr.bf16.mxu0 0
        %1777 = vmatpush1.bf16.msra.mxu0 0
        %1778 = vmatprep.subr.bf16.mxu0 0
        %1779 = vmatpush1.bf16.msra.mxu0 0
        %1780 = vmatprep.subr.bf16.mxu0 0
        %1781 = vmatpush1.bf16.msra.mxu0 0
        %1782 = vmatprep.subr.bf16.mxu0 0
        %1783 = vmatpush1.bf16.msra.mxu0 0
        %1784 = vmatprep.subr.bf16.mxu0 0
        %1785 = vmatpush1.bf16.msra.mxu0 0
        %1786 = vmatprep.subr.bf16.mxu0 0
        %1787 = vmatpush1.bf16.msra.mxu0 0
        %1788 = vmatprep.subr.bf16.mxu0 0
        %1789 = vmatpush1.bf16.msra.mxu0 0
        %1790 = vmatprep.subr.bf16.mxu0 0
        %1791 = vmatpush1.bf16.msra.mxu0 0
        %1792 = vmatprep.subr.bf16.mxu0 0
        %1793 = vmatpush1.bf16.msra.mxu0 0
        %1794 = vmatprep.subr.bf16.mxu0 0
        %1795 = vmatpush1.bf16.msra.mxu0 0
        %1796 = vmatprep.mubr.bf16.mxu0 0
        %1797 = vmatmul.mubr.bf16.gmra.mrb[0].mxu0 %v1759
        %v1798 = vpop.f32.mrb[0].mxu0
        %v1799 = vadd.f32 0.0, %v1798
        %v1800 = vpop.f32.mrb[0].mxu0
        %v1801 = vpop.f32.mrb[0].mxu0
        %v1802 = vpop.f32.mrb[0].mxu0
        %1803 = vdwg.mxu0
        %1805 = vrot.lane.b32.xlu0 %v1799, 24
        %v1806 = vpop.permute.xlu0 %1805
        %vm1808 = vcmask 257216
        %1809 = vst.msk [vmem:[#allocation3] sm:$0xf] %vm1808, %v1806
        %v1810 = vld [vmem:[#allocation3] sm:$0xf]
        %v1811 = vpack.c.bf16 %v1810, %v1810
        %v1812 = vld [vmem:[%s928] sm:$0xf]
        %v1813 = vld [vmem:[%s928 + $0x4] sm:$0xf]
        %v1814 = vld [vmem:[%s928 + $0x8] sm:$0xf]
        %v1815 = vld [vmem:[%s928 + $0xc] sm:$0xf]
        %v1816 = vld [vmem:[%s931] sm:$0x1]
        %v1818 = vlaneseq
        %v1819 = vshrl.u32 %v1818, 7
        %v1820 = vsub.s32 0, %v1819
        %v1821 = vrot.slane %v1816, %v1820
        %v1827 = vunpack.c.l.b16 %v1812
        %v1828 = vunpack.c.l.b16 %v1813
        %v1829 = vunpack.c.l.b16 %v1814
        %v1830 = vunpack.c.l.b16 %v1815
        %v1831 = vpack.c.b16 %v1828, %v1827
        %v1832 = vpack.c.b16 %v1830, %v1829
        %v1836 = vsel %vm1172, %v1811, 0
        %1838 = vmatprep.subr.bf16.mxu0 0
        %1839 = vmatpush1.bf16.msra.mxu0 %v1831
        %1840 = vmatprep.subr.bf16.mxu0 0
        %1841 = vmatpush1.bf16.msra.mxu0 %v1832
        %1842 = vmatprep.subr.bf16.mxu0 0
        %1843 = vmatpush1.bf16.msra.mxu0 0
        %1844 = vmatprep.subr.bf16.mxu0 0
        %1845 = vmatpush1.bf16.msra.mxu0 0
        %1846 = vmatprep.subr.bf16.mxu0 0
        %1847 = vmatpush1.bf16.msra.mxu0 0
        %1848 = vmatprep.subr.bf16.mxu0 0
        %1849 = vmatpush1.bf16.msra.mxu0 0
        %1850 = vmatprep.subr.bf16.mxu0 0
        %1851 = vmatpush1.bf16.msra.mxu0 0
        %1852 = vmatprep.subr.bf16.mxu0 0
        %1853 = vmatpush1.bf16.msra.mxu0 0
        %1854 = vmatprep.subr.bf16.mxu0 0
        %1855 = vmatpush1.bf16.msra.mxu0 0
        %1856 = vmatprep.subr.bf16.mxu0 0
        %1857 = vmatpush1.bf16.msra.mxu0 0
        %1858 = vmatprep.subr.bf16.mxu0 0
        %1859 = vmatpush1.bf16.msra.mxu0 0
        %1860 = vmatprep.subr.bf16.mxu0 0
        %1861 = vmatpush1.bf16.msra.mxu0 0
        %1862 = vmatprep.subr.bf16.mxu0 0
        %1863 = vmatpush1.bf16.msra.mxu0 0
        %1864 = vmatprep.subr.bf16.mxu0 0
        %1865 = vmatpush1.bf16.msra.mxu0 0
        %1866 = vmatprep.subr.bf16.mxu0 0
        %1867 = vmatpush1.bf16.msra.mxu0 0
        %1868 = vmatprep.subr.bf16.mxu0 0
        %1869 = vmatpush1.bf16.msra.mxu0 0
        %1870 = vmatprep.mubr.bf16.mxu0 0
        %1871 = vmatmul.mubr.bf16.gmra.mrb[0].mxu0 %v1836
        %v1872 = vpop.f32.mrb[0].mxu0
        %v1873 = vadd.f32 %v1821, %v1872
        %v1874 = vpop.f32.mrb[0].mxu0
        %v1875 = vpop.f32.mrb[0].mxu0
        %v1876 = vpop.f32.mrb[0].mxu0
        %1877 = vdwg.mxu0
        %v1878 = vadd.f32 %v1116, %v1873
        %v1879 = vld [vmem:[%s934] sm:$0x1]
        %v1880 = vld [vmem:[%s937] sm:$0x1]
        %v1881 = vsel %vm1119, %v1878, 0.0
        %1882 = vadd.xlane.f32.xlu0 %v1881
        %v1883 = vpop.xlane.xlu0 %1882
        %v1884 = vmul.f32 %v1883, %v1123
        %v1885 = vsub.f32 %v1878, %v1884
        %v1886 = vmul.f32 %v1885, %v1885
        %v1887 = vsel %vm1119, %v1886, 0.0
        %1888 = vadd.xlane.f32.xlu0 %v1887
        %v1889 = vpop.xlane.xlu0 %1888
        %v1890 = vmul.f32 %v1889, %v1123
        %v1891 = vadd.f32 %v1890, 1e-06
        %v1892 = vrsqrt.pop %v1891
        %v1893 = vmul.f32 %v1885, %v1892
        %v1895 = vlaneseq
        %v1896 = vshrl.u32 %v1895, 7
        %v1897 = vsub.s32 0, %v1896
        %v1898 = vrot.slane %v1879, %v1897
        %v1900 = vmul.f32 %v1893, %v1898
        %v1902 = vlaneseq
        %v1903 = vshrl.u32 %v1902, 7
        %v1904 = vsub.s32 0, %v1903
        %v1905 = vrot.slane %v1880, %v1904
        %v1907 = vadd.f32 %v1900, %v1905
        %v1908 = vpack.c.bf16 %v1907, %v1907
        %v1909 = vld [vmem:[%s942] sm:$0xf]
        %v1910 = vld [vmem:[%s942 + $0x4] sm:$0xf]
        %v1911 = vld [vmem:[%s942 + $0x8] sm:$0xf]
        %v1912 = vld [vmem:[%s942 + $0xc] sm:$0xf]
        %v1913 = vld [vmem:[%s945] sm:$0x1]
        %v1915 = vlaneseq
        %v1916 = vshrl.u32 %v1915, 7
        %v1917 = vsub.s32 0, %v1916
        %v1918 = vrot.slane %v1913, %v1917
        %v1924 = vunpack.c.l.b16 %v1909
        %v1925 = vunpack.c.l.b16 %v1910
        %v1926 = vunpack.c.l.b16 %v1911
        %v1927 = vunpack.c.l.b16 %v1912
        %v1928 = vpack.c.b16 %v1925, %v1924
        %v1929 = vpack.c.b16 %v1927, %v1926
        %v1933 = vsel %vm1172, %v1908, 0
        %1935 = vmatprep.subr.bf16.mxu0 0
        %1936 = vmatpush1.bf16.msra.mxu0 %v1928
        %1937 = vmatprep.subr.bf16.mxu0 0
        %1938 = vmatpush1.bf16.msra.mxu0 %v1929
        %1939 = vmatprep.subr.bf16.mxu0 0
        %1940 = vmatpush1.bf16.msra.mxu0 0
        %1941 = vmatprep.subr.bf16.mxu0 0
        %1942 = vmatpush1.bf16.msra.mxu0 0
        %1943 = vmatprep.subr.bf16.mxu0 0
        %1944 = vmatpush1.bf16.msra.mxu0 0
        %1945 = vmatprep.subr.bf16.mxu0 0
        %1946 = vmatpush1.bf16.msra.mxu0 0
        %1947 = vmatprep.subr.bf16.mxu0 0
        %1948 = vmatpush1.bf16.msra.mxu0 0
        %1949 = vmatprep.subr.bf16.mxu0 0
        %1950 = vmatpush1.bf16.msra.mxu0 0
        %1951 = vmatprep.subr.bf16.mxu0 0
        %1952 = vmatpush1.bf16.msra.mxu0 0
        %1953 = vmatprep.subr.bf16.mxu0 0
        %1954 = vmatpush1.bf16.msra.mxu0 0
        %1955 = vmatprep.subr.bf16.mxu0 0
        %1956 = vmatpush1.bf16.msra.mxu0 0
        %1957 = vmatprep.subr.bf16.mxu0 0
        %1958 = vmatpush1.bf16.msra.mxu0 0
        %1959 = vmatprep.subr.bf16.mxu0 0
        %1960 = vmatpush1.bf16.msra.mxu0 0
        %1961 = vmatprep.subr.bf16.mxu0 0
        %1962 = vmatpush1.bf16.msra.mxu0 0
        %1963 = vmatprep.subr.bf16.mxu0 0
        %1964 = vmatpush1.bf16.msra.mxu0 0
        %1965 = vmatprep.subr.bf16.mxu0 0
        %1966 = vmatpush1.bf16.msra.mxu0 0
        %1967 = vmatprep.mubr.bf16.mxu0 0
        %1968 = vmatmul.mubr.bf16.gmra.mrb[0].mxu0 %v1933
        %v1969 = vpop.f32.mrb[0].mxu0
        %v1970 = vadd.f32 %v1918, %v1969
        %v1971 = vpop.f32.mrb[0].mxu0
        %v1972 = vpop.f32.mrb[0].mxu0
        %v1973 = vpop.f32.mrb[0].mxu0
        %1974 = vdwg.mxu0
        %v1975 = vmul.f32 %v1970, 0.5
        %v1976 = vmul.f32 %v1970, 0.044715
        %v1977 = vmul.f32 %v1976, %v1970
        %v1978 = vmul.f32 %v1977, %v1970
        %v1979 = vadd.f32 %v1970, %v1978
        %v1980 = vmul.f32 %v1979, 0.7978846
        %v1981 = vtanh.pop %v1980
        %v1982 = vadd.f32 %v1981, 1.0
        %v1983 = vmul.f32 %v1975, %v1982
        %v1984 = vpack.c.bf16 %v1983, %v1983
        %v1985 = vld [vmem:[%s950] sm:$0xf]
        %v1986 = vld [vmem:[%s950 + $0x4] sm:$0xf]
        %v1987 = vld [vmem:[%s950 + $0x8] sm:$0xf]
        %v1988 = vld [vmem:[%s950 + $0xc] sm:$0xf]
        %v1989 = vld [vmem:[%s950 + $0x10] sm:$0xf]
        %v1990 = vld [vmem:[%s950 + $0x14] sm:$0xf]
        %v1991 = vld [vmem:[%s950 + $0x18] sm:$0xf]
        %v1992 = vld [vmem:[%s950 + $0x1c] sm:$0xf]
        %v1993 = vld [vmem:[%s953] sm:$0x1]
        %v1995 = vlaneseq
        %v1996 = vshrl.u32 %v1995, 7
        %v1997 = vsub.s32 0, %v1996
        %v1998 = vrot.slane %v1993, %v1997
        %v2008 = vunpack.c.l.b16 %v1985
        %v2009 = vunpack.c.l.b16 %v1986
        %v2010 = vunpack.c.l.b16 %v1987
        %v2011 = vunpack.c.l.b16 %v1988
        %v2012 = vunpack.c.l.b16 %v1989
        %v2013 = vunpack.c.l.b16 %v1990
        %v2014 = vunpack.c.l.b16 %v1991
        %v2015 = vunpack.c.l.b16 %v1992
        %v2016 = vpack.c.b16 %v2009, %v2008
        %v2017 = vpack.c.b16 %v2011, %v2010
        %v2018 = vpack.c.b16 %v2013, %v2012
        %v2019 = vpack.c.b16 %v2015, %v2014
        %vm2024 = vcmask 523264
        %v2026 = vsel %vm2024, %v1984, 0
        %2028 = vmatprep.subr.bf16.mxu0 0
        %2029 = vmatpush1.bf16.msra.mxu0 %v2016
        %2030 = vmatprep.subr.bf16.mxu0 0
        %2031 = vmatpush1.bf16.msra.mxu0 %v2017
        %2032 = vmatprep.subr.bf16.mxu0 0
        %2033 = vmatpush1.bf16.msra.mxu0 %v2018
        %2034 = vmatprep.subr.bf16.mxu0 0
        %2035 = vmatpush1.bf16.msra.mxu0 %v2019
        %2036 = vmatprep.subr.bf16.mxu0 0
        %2037 = vmatpush1.bf16.msra.mxu0 0
        %2038 = vmatprep.subr.bf16.mxu0 0
        %2039 = vmatpush1.bf16.msra.mxu0 0
        %2040 = vmatprep.subr.bf16.mxu0 0
        %2041 = vmatpush1.bf16.msra.mxu0 0
        %2042 = vmatprep.subr.bf16.mxu0 0
        %2043 = vmatpush1.bf16.msra.mxu0 0
        %2044 = vmatprep.subr.bf16.mxu0 0
        %2045 = vmatpush1.bf16.msra.mxu0 0
        %2046 = vmatprep.subr.bf16.mxu0 0
        %2047 = vmatpush1.bf16.msra.mxu0 0
        %2048 = vmatprep.subr.bf16.mxu0 0
        %2049 = vmatpush1.bf16.msra.mxu0 0
        %2050 = vmatprep.subr.bf16.mxu0 0
        %2051 = vmatpush1.bf16.msra.mxu0 0
        %2052 = vmatprep.subr.bf16.mxu0 0
        %2053 = vmatpush1.bf16.msra.mxu0 0
        %2054 = vmatprep.subr.bf16.mxu0 0
        %2055 = vmatpush1.bf16.msra.mxu0 0
        %2056 = vmatprep.subr.bf16.mxu0 0
        %2057 = vmatpush1.bf16.msra.mxu0 0
        %2058 = vmatprep.subr.bf16.mxu0 0
        %2059 = vmatpush1.bf16.msra.mxu0 0
        %2060 = vmatprep.mubr.bf16.mxu0 0
        %2061 = vmatmul.mubr.bf16.gmra.mrb[0].mxu0 %v2026
        %v2062 = vpop.f32.mrb[0].mxu0
        %v2063 = vadd.f32 %v1998, %v2062
        %v2064 = vpop.f32.mrb[0].mxu0
        %v2065 = vpop.f32.mrb[0].mxu0
        %v2066 = vpop.f32.mrb[0].mxu0
        %2067 = vdwg.mxu0
        %v2068 = vadd.f32 %v1878, %v2063
        %2069 = vst.msk [vmem:[#allocation2] sm:$0xf] %vm1119, %v2068
        %p2070 = scmp.eq.s32.totalorder %s41, 1
        // Predicated region
        $region113: #{siglip_vision_model.1} parent=107 // pred_check
          %p2071 = pneg %p2070
        $region114: #{siglip_vision_model.1} parent=107 // pred_check_branch
          %2073 = sbr.rel (%p2071) target = $region116
        $region115: #{siglip_vision_model.1} parent=107 // pred_region
          %v2074 = vld [vmem:[%s20] sm:$0x1]
          %v2075 = vld [vmem:[%s21] sm:$0x1]
          %v2076 = vsel %vm1119, %v2068, 0.0
          %2077 = vadd.xlane.f32.xlu0 %v2076
          %v2078 = vpop.xlane.xlu0 %2077
          %v2079 = vmul.f32 %v2078, %v1123
          %v2080 = vsub.f32 %v2068, %v2079
          %v2081 = vmul.f32 %v2080, %v2080
          %v2082 = vsel %vm1119, %v2081, 0.0
          %2083 = vadd.xlane.f32.xlu0 %v2082
          %v2084 = vpop.xlane.xlu0 %2083
          %v2085 = vmul.f32 %v2084, %v1123
          %v2086 = vadd.f32 %v2085, 1e-06
          %v2087 = vrsqrt.pop %v2086
          %v2088 = vmul.f32 %v2080, %v2087
          %v2090 = vlaneseq
          %v2091 = vshrl.u32 %v2090, 7
          %v2092 = vsub.s32 0, %v2091
          %v2093 = vrot.slane %v2074, %v2092
          %v2095 = vmul.f32 %v2088, %v2093
          %v2097 = vlaneseq
          %v2098 = vshrl.u32 %v2097, 7
          %v2099 = vsub.s32 0, %v2098
          %v2100 = vrot.slane %v2075, %v2099
          %v2102 = vadd.f32 %v2095, %v2100
          %2103 = vst.msk [vmem:[%s888] sm:$0xf] %vm1119, %v2102
        $region116: #{siglip_vision_model.1} parent=107 // pred_fallthru
          _
        %s2104 = sand.u32 %s603, 1
        %s2105 = scalar_lea.sflag [#allocation5], %s2104
        %s2106 = sand.u32 %s603, 1
        %s2107 = smul.addr %s2106, 4
        %s2108 = scalar_lea.vmem [#allocation4], %s2107
        // Predicated region
        $region117: #{siglip_vision_model.1} parent=107 // pred_check
          %p2109 = pneg %p613
        $region118: #{siglip_vision_model.1} parent=107 // pred_check_branch
          %2111 = sbr.rel (%p2109) target = $region120
        $region119: #{siglip_vision_model.1} parent=107 // pred_region
          %s2113 = ssub.s32 64, 64
          %2114 = vsyncadd %s2105, %s2113
          %s2115 = smul.addr %s40, 64
          %s2116 = scalar_lea.hbm %s22, %s2115
          %s2118 = sshll.u32 %s2108, 4
          %s2119 = int_to_ptr.vmem [resolvable:$true] %s2118
          %2121 = dma.vmem_to_hbm [thread:$0]  %s2119, 64, %s2116, %s2105
        $region120: #{siglip_vision_model.1} parent=107 // pred_fallthru
          _
      $region108: #{siglip_vision_model.1} parent=5 // pred_fallthru
        _
      %p2122 = scmp.le.s32.totalorder 2, %s31
      // Predicated region
      $region121: #{siglip_vision_model.1} parent=5 // pred_check
        %p2123 = pneg %p2122
      $region122: #{siglip_vision_model.1} parent=5 // pred_check_branch
        %2125 = sbr.rel (%p2123) target = $region124
      $region123: #{siglip_vision_model.1} parent=5 // pred_region
        %s2126 = ssub.s32 %s31, 2
        // Predicated region
        $region125: #{siglip_vision_model.1} parent=123 // pred_check
          %p2127 = pneg %p619
        $region126: #{siglip_vision_model.1} parent=123 // pred_check_branch
          %2129 = sbr.rel (%p2127) target = $region128
        $region127: #{siglip_vision_model.1} parent=123 // pred_region
          %s2130 = sand.u32 %s604, 1
          %s2131 = scalar_lea.sflag [#allocation5], %s2130
          %s2132 = sand.u32 %s604, 1
          %s2133 = smul.addr %s2132, 4
          %s2134 = scalar_lea.vmem [#allocation4], %s2133
          %2135 = dma.done %s2131, 64
        $region128: #{siglip_vision_model.1} parent=123 // pred_fallthru
          _
      $region124: #{siglip_vision_model.1} parent=5 // pred_fallthru
        _
    $region6: #{siglip_vision_model.1} parent=1 // loop_footer
      %s35 = sadd.s32 1, %s31
    $region7: #{siglip_vision_model.1} parent=1 // loop_footer_branch
      %30 = sbr.rel target = $region3
    $region8: #{siglip_vision_model.1} parent=1 // loop_exit
      _
    %2136 = vsyncpa [#allocation5], 1
    %s2137 = scalar_lea.sflag [#allocation5], 1
    %2138 = vsyncpa %s2137, 1

</llo_original>
